<compile_context>
chip_gen: v7x
topology: tpu7x:2x2x1
jax: 0.10.0
libtpu: 0.0.40
codegen_flags: <defaults>
</compile_context>

<pallas_src>
import math

import jax
import jax.numpy as jnp
from jax.experimental import pallas as pl
from jax.experimental.pallas import tpu as pltpu


def _osg_decoder_kernel(x_ref, w1_ref, b1_ref, w2_ref, b2_ref, y_ref):
    # x_ref:  (TM, C)  bf16 row tile of flattened sampled features
    # w1_ref: (C, H)   bf16 first FC (lr_mul gain folded in)
    # b1_ref: (1, H)   f32
    # w2_ref: (H, O)   f32 second FC, O = 1 + decoder_output_dim
    # b2_ref: (1, O)   f32
    # y_ref:  (TM, O)  f32 fused output: col 0 = sigma, cols 1.. = rgb
    x = x_ref[...]

    # FC1 (bf16 x bf16 -> f32 accumulate on the MXU) + Softplus
    h = jnp.dot(x, w1_ref[...], preferred_element_type=jnp.float32) + b1_ref[...]
    h = jnp.logaddexp(h, 0.0)  # softplus, numerically stable (EUP slack hides it)

    # FC2 (f32)
    y = jnp.dot(h, w2_ref[...], preferred_element_type=jnp.float32) + b2_ref[...]

    # Fused epilogue: column 0 stays raw (sigma), columns 1.. get the EG3D
    # sigmoid * (1 + 2*0.001) - 0.001 rgb mapping.  Single lane-dense store.
    col = jax.lax.broadcasted_iota(jnp.int32, y.shape, dimension=1)
    rgb = jax.nn.sigmoid(y) * (1.0 + 2.0 * 0.001) - 0.001
    y_ref[...] = jnp.where(col == 0, y, rgb).astype(y_ref.dtype)


def osg_decoder_forward(sampled_features, ray_directions, params, *, row_tile=512):
    """Pallas implementation of OSGDecoder.forward.

    sampled_features: (N, M, C) float32
    ray_directions:   (N, M, 3) float32 (unused by the reference forward)
    params: dict with raw (un-scaled) FullyConnectedLayer params + lr_mul.
    Returns {'rgb': (N, M, O-1), 'sigma': (N, M, 1)}.
    """
    del ray_directions  # unused by the reference forward

    N, M, C = sampled_features.shape
    lr_mul = params["lr_mul"]

    # FullyConnectedLayer semantics: w_eff = w * (lr_mul / sqrt(in)), b_eff = b * lr_mul
    # (glue: fold the gains into the weights before the kernel).
    w1 = (params["w1"] * (lr_mul / math.sqrt(C))).T.astype(jnp.bfloat16)      # (C, H)
    b1 = (params["b1"] * lr_mul).reshape(1, -1).astype(jnp.float32)           # (1, H)
    H = w1.shape[1]
    w2 = (params["w2"] * (lr_mul / math.sqrt(H))).T.astype(jnp.float32)       # (H, O)
    b2 = (params["b2"] * lr_mul).reshape(1, -1).astype(jnp.float32)           # (1, O)
    O = w2.shape[1]

    rows = N * M
    x2d = sampled_features.reshape(rows, C).astype(jnp.bfloat16)

    # Pad the row axis up to a multiple of row_tile; padded rows compute
    # garbage that is trimmed after the kernel (no in-kernel masking needed).
    padded_rows = row_tile * pl.cdiv(rows, row_tile)
    if padded_rows != rows:
        x2d = jnp.pad(x2d, ((0, padded_rows - rows), (0, 0)))

    grid = (padded_rows // row_tile,)

    weight_bytes = (C * H) * 2 + H * 4 + (H * O) * 4 + O * 4
    cost = pl.CostEstimate(
        flops=2 * padded_rows * (C * H + H * O),
        transcendentals=padded_rows * (H + O),            # softplus + sigmoid
        bytes_accessed=padded_rows * C * 2 + padded_rows * O * 4 + weight_bytes,
    )

    y2d = pl.pallas_call(
        _osg_decoder_kernel,
        out_shape=jax.ShapeDtypeStruct((padded_rows, O), jnp.float32),
        grid_spec=pl.GridSpec(
            grid=grid,
            in_specs=[
                pl.BlockSpec((row_tile, C), lambda i: (i, 0)),   # x row tile
                pl.BlockSpec((C, H), lambda i: (0, 0)),          # w1 (resident)
                pl.BlockSpec((1, H), lambda i: (0, 0)),          # b1 (resident)
                pl.BlockSpec((H, O), lambda i: (0, 0)),          # w2 (resident)
                pl.BlockSpec((1, O), lambda i: (0, 0)),          # b2 (resident)
            ],
            out_specs=pl.BlockSpec((row_tile, O), lambda i: (i, 0)),
        ),
        compiler_params=pltpu.CompilerParams(
            dimension_semantics=("parallel",),
        ),
        cost_estimate=cost,
    )(x2d, w1, b1, w2, b2)

    y2d = y2d[:rows]
    sigma = y2d[:, 0:1].reshape(N, M, 1)
    rgb = y2d[:, 1:].reshape(N, M, O - 1)
    return {"rgb": rgb, "sigma": sigma}


def _reference_forward(sampled_features, params, *, match_bf16=True):
    """Pure-JAX reference matching the PyTorch module semantics.

    With match_bf16=True the input and first-layer weight are cast through
    bfloat16 exactly like the kernel does, so the comparison tolerance can
    stay tight.
    """
    N, M, C = sampled_features.shape
    lr_mul = params["lr_mul"]
    w1 = params["w1"] * (lr_mul / math.sqrt(C))
    b1 = params["b1"] * lr_mul
    H = w1.shape[0]
    w2 = params["w2"] * (lr_mul / math.sqrt(H))
    b2 = params["b2"] * lr_mul

    x = sampled_features.reshape(N * M, C)
    if match_bf16:
        x = x.astype(jnp.bfloat16).astype(jnp.float32)
        w1 = w1.astype(jnp.bfloat16).astype(jnp.float32)
    x = x @ w1.T + b1
    x = jax.nn.softplus(x)
    x = x @ w2.T + b2
    x = x.reshape(N, M, -1)
    rgb = jax.nn.sigmoid(x[..., 1:]) * (1 + 2 * 0.001) - 0.001
    sigma = x[..., 0:1]
    return {"rgb": rgb, "sigma": sigma}


if __name__ == "__main__":
    # Module config: n_features = C, hidden_dim = 64,
    # options = {'decoder_lr_mul': 1.0, 'decoder_output_dim': 3}
    N, M, C = 2, 64, 32
    HIDDEN = 64
    OUT = 1 + 3          # sigma + rgb(3)
    LR_MUL = 1.0

    key = jax.random.PRNGKey(0)
    k_feat, k_dir, k_w1, k_w2 = jax.random.split(key, 4)

    sampled_features = jax.random.normal(k_feat, (N, M, C), dtype=jnp.float32)
    ray_directions = jax.random.normal(k_dir, (N, M, 3), dtype=jnp.float32)

    # FullyConnectedLayer init: weight ~ randn([out, in]) / lr_multiplier, bias = 0
    params = {
        "w1": jax.random.normal(k_w1, (HIDDEN, C), dtype=jnp.float32) / LR_MUL,
        "b1": jnp.zeros((HIDDEN,), dtype=jnp.float32),
        "w2": jax.random.normal(k_w2, (OUT, HIDDEN), dtype=jnp.float32) / LR_MUL,
        "b2": jnp.zeros((OUT,), dtype=jnp.float32),
        "lr_mul": LR_MUL,
    }

    out = osg_decoder_forward(sampled_features, ray_directions, params)
    out = jax.tree_util.tree_map(jax.block_until_ready, out)

    assert out["rgb"].shape == (N, M, 3)
    assert out["sigma"].shape == (N, M, 1)

    # Tight check against a bf16-input-matched reference (same rounding as kernel).
    ref = _reference_forward(sampled_features, params, match_bf16=True)
    assert jnp.allclose(out["rgb"], ref["rgb"], atol=1e-4, rtol=1e-4)
    assert jnp.allclose(out["sigma"], ref["sigma"], atol=1e-3, rtol=1e-4)

    # Loose sanity check against the full-f32 reference (bf16 input quantization).
    ref32 = _reference_forward(sampled_features, params, match_bf16=False)
    assert jnp.allclose(out["rgb"], ref32["rgb"], atol=5e-2, rtol=5e-2)
    assert jnp.allclose(out["sigma"], ref32["sigma"], atol=1e-1, rtol=5e-2)

    print("KERNEL_OK")
</pallas_src>

<mosaic_0001>
module attributes {stable_mosaic.version = 11 : i64} {
  func.func @_osg_decoder_kernel(%arg0: i32, %arg1: memref<512x32xbf16, #tpu.memory_space<vmem>>, %arg2: memref<32x64xbf16, #tpu.memory_space<vmem>>, %arg3: memref<1x64xf32, #tpu.memory_space<vmem>>, %arg4: memref<64x4xf32, #tpu.memory_space<vmem>>, %arg5: memref<1x4xf32, #tpu.memory_space<vmem>>, %arg6: memref<512x4xf32, #tpu.memory_space<vmem>>) attributes {dimension_semantics = [#tpu.dimension_semantics<parallel>], iteration_bounds = array<i64: 1>, scalar_prefetch = 0 : i64, scratch_operands = 0 : i64, tpu.core_type = #tpu.core_type<tc>, window_params = [{transform_indices = @transform_0, window_bounds = array<i64: 512, 32>}, {pipeline_mode = #tpu.pipeline_mode<synchronous>, transform_indices = @transform_1, window_bounds = array<i64: 32, 64>}, {pipeline_mode = #tpu.pipeline_mode<synchronous>, transform_indices = @transform_2, window_bounds = array<i64: 1, 64>}, {pipeline_mode = #tpu.pipeline_mode<synchronous>, transform_indices = @transform_3, window_bounds = array<i64: 64, 4>}, {pipeline_mode = #tpu.pipeline_mode<synchronous>, transform_indices = @transform_4, window_bounds = array<i64: 1, 4>}, {transform_indices = @transform_5, window_bounds = array<i64: 512, 4>}]} {
    %c0 = arith.constant 0 : index
    %c0_0 = arith.constant 0 : index
    %0 = vector.load %arg1[%c0, %c0_0] : memref<512x32xbf16, #tpu.memory_space<vmem>>, vector<512x32xbf16>
    %c0_1 = arith.constant 0 : index
    %c0_2 = arith.constant 0 : index
    %1 = vector.load %arg2[%c0_1, %c0_2] : memref<32x64xbf16, #tpu.memory_space<vmem>>, vector<32x64xbf16>
    %cst = arith.constant dense<0.000000e+00> : vector<512x64xf32>
    %2 = tpu.matmul %0, %1, %cst {dimension_numbers = #tpu.dot_dimension_numbers<[1], [0], [0], [1], [0, 0, 1, 1], [], []>} : vector<512x32xbf16>, vector<32x64xbf16>, vector<512x64xf32> -> vector<512x64xf32>
    %c0_3 = arith.constant 0 : index
    %c0_4 = arith.constant 0 : index
    %3 = vector.load %arg3[%c0_3, %c0_4] : memref<1x64xf32, #tpu.memory_space<vmem>>, vector<1x64xf32>
    %4 = vector.broadcast %3 : vector<1x64xf32> to vector<512x64xf32>
    %5 = arith.addf %2, %4 : vector<512x64xf32>
    %cst_5 = arith.constant 0.000000e+00 : f32
    %6 = vector.broadcast %cst_5 : f32 to vector<512x64xf32>
    %7 = arith.maximumf %5, %6 : vector<512x64xf32>
    %8 = vector.broadcast %cst_5 : f32 to vector<512x64xf32>
    %9 = arith.subf %5, %8 : vector<512x64xf32>
    %10 = arith.cmpf one, %9, %9 : vector<512x64xf32>
    %11 = vector.broadcast %cst_5 : f32 to vector<512x64xf32>
    %12 = arith.addf %5, %11 : vector<512x64xf32>
    %13 = math.absf %9 : vector<512x64xf32>
    %cst_6 = arith.constant 0.000000e+00 : f32
    %14 = vector.broadcast %cst_6 : f32 to vector<512x64xf32>
    %15 = arith.subf %14, %13 : vector<512x64xf32>
    %16 = math.exp %15 : vector<512x64xf32>
    %17 = math.log1p %16 : vector<512x64xf32>
    %18 = arith.addf %7, %17 : vector<512x64xf32>
    %19 = arith.select %10, %12, %18 : vector<512x64xi1>, vector<512x64xf32>
    %c0_7 = arith.constant 0 : index
    %c0_8 = arith.constant 0 : index
    %20 = vector.load %arg4[%c0_7, %c0_8] : memref<64x4xf32, #tpu.memory_space<vmem>>, vector<64x4xf32>
    %cst_9 = arith.constant dense<0.000000e+00> : vector<512x4xf32>
    %21 = tpu.matmul %19, %20, %cst_9 {dimension_numbers = #tpu.dot_dimension_numbers<[1], [0], [0], [1], [0, 0, 1, 1], [], []>} : vector<512x64xf32>, vector<64x4xf32>, vector<512x4xf32> -> vector<512x4xf32>
    %c0_10 = arith.constant 0 : index
    %c0_11 = arith.constant 0 : index
    %22 = vector.load %arg5[%c0_10, %c0_11] : memref<1x4xf32, #tpu.memory_space<vmem>>, vector<1x4xf32>
    %23 = vector.broadcast %22 : vector<1x4xf32> to vector<512x4xf32>
    %24 = arith.addf %21, %23 : vector<512x4xf32>
    %25 = tpu.iota {dimensions = array<i32: 1>} : vector<512x4xi32>
    %26 = arith.negf %24 : vector<512x4xf32>
    %27 = math.exp %26 : vector<512x4xf32>
    %cst_12 = arith.constant 1.000000e+00 : f32
    %28 = vector.broadcast %cst_12 : f32 to vector<512x4xf32>
    %29 = arith.addf %28, %27 : vector<512x4xf32>
    %30 = arith.divf %28, %29 : vector<512x4xf32>
    %cst_13 = arith.constant 1.002000e+00 : f32
    %31 = vector.broadcast %cst_13 : f32 to vector<512x4xf32>
    %32 = arith.mulf %30, %31 : vector<512x4xf32>
    %cst_14 = arith.constant 1.000000e-03 : f32
    %33 = vector.broadcast %cst_14 : f32 to vector<512x4xf32>
    %34 = arith.subf %32, %33 : vector<512x4xf32>
    %c0_i32 = arith.constant 0 : i32
    %35 = vector.broadcast %c0_i32 : i32 to vector<512x4xi32>
    %36 = arith.cmpi eq, %25, %35 : vector<512x4xi32>
    %37 = arith.select %36, %24, %34 : vector<512x4xi1>, vector<512x4xf32>
    %c0_15 = arith.constant 0 : index
    %c0_16 = arith.constant 0 : index
    %38 = vector.load %arg6[%c0_15, %c0_16] : memref<512x4xf32, #tpu.memory_space<vmem>>, vector<512x4xf32>
    tpu.vector_store %arg6[%c0_15, %c0_16], %37 {strides = array<i32>} : memref<512x4xf32, #tpu.memory_space<vmem>>, vector<512x4xf32>,
    return
  }
  func.func @transform_0(%arg0: i32) -> (i32, i32) {
    %c0_i32 = arith.constant 0 : i32
    %c0_i32_0 = arith.constant 0 : i32
    return %arg0, %c0_i32 : i32, i32
  }
  func.func @transform_1(%arg0: i32) -> (i32, i32) {
    %c0_i32 = arith.constant 0 : i32
    %c0_i32_0 = arith.constant 0 : i32
    %c0_i32_1 = arith.constant 0 : i32
    return %c0_i32, %c0_i32_0 : i32, i32
  }
  func.func @transform_2(%arg0: i32) -> (i32, i32) {
    %c0_i32 = arith.constant 0 : i32
    %c0_i32_0 = arith.constant 0 : i32
    %c0_i32_1 = arith.constant 0 : i32
    return %c0_i32, %c0_i32_0 : i32, i32
  }
  func.func @transform_3(%arg0: i32) -> (i32, i32) {
    %c0_i32 = arith.constant 0 : i32
    %c0_i32_0 = arith.constant 0 : i32
    %c0_i32_1 = arith.constant 0 : i32
    return %c0_i32, %c0_i32_0 : i32, i32
  }
  func.func @transform_4(%arg0: i32) -> (i32, i32) {
    %c0_i32 = arith.constant 0 : i32
    %c0_i32_0 = arith.constant 0 : i32
    %c0_i32_1 = arith.constant 0 : i32
    return %c0_i32, %c0_i32_0 : i32, i32
  }
  func.func @transform_5(%arg0: i32) -> (i32, i32) {
    %c0_i32 = arith.constant 0 : i32
    %c0_i32_0 = arith.constant 0 : i32
    return %arg0, %c0_i32 : i32, i32
  }
}

</mosaic_0001>

<llo_original>
// kernel: tpu_custom_call.1
$region0: #{tpu_custom_call.1}
  #allocation0 [shape = 'u32[]', space=smem, size = 0x4, offset = 0x4, fixed_abs, tag = 'smem constant byte address 0x4 - core index']
  #allocation1 [shape = 'u32[144,128]{1,0:T(1,128)}', space=vmem, size = 0x12000, scoped, tag = 'internal scratch']
  %s0 = inlined_call_operand.vmem [shape: bf16[512,32], index: 0, kind: input, shape index: {}]
  %s1 = inlined_call_operand.vmem [shape: bf16[32,64], index: 1, kind: input, shape index: {}]
  %s2 = inlined_call_operand.vmem [shape: f32[1,64], index: 2, kind: input, shape index: {}]
  %s3 = inlined_call_operand.vmem [shape: f32[64,4], index: 3, kind: input, shape index: {}]
  %s4 = inlined_call_operand.vmem [shape: f32[1,4], index: 4, kind: input, shape index: {}]
  %s5 = inlined_call_operand.vmem [shape: f32[512,4], index: 5, kind: output, shape index: {}]
  %s6 = sld [smem:[#allocation0]]
  $region30: #{tpu_custom_call.1} parent=0
    _
  %s8 = ssub.s32 1, %s6
  %s9 = scalar_select 0, %s8, %s6
  // Predicated region
  $region2: #{tpu_custom_call.1} parent=0 // pred_check
    _
  $region3: #{tpu_custom_call.1} parent=0 // pred_check_branch
    %11 = sbr.rel (0) target = $region5
  $region4: #{tpu_custom_call.1} parent=0 // pred_region
    _
  $region5: #{tpu_custom_call.1} parent=0 // pred_fallthru
    _
  // Predicated region
  $region6: #{tpu_custom_call.1} parent=0 // pred_check
    _
  $region7: #{tpu_custom_call.1} parent=0 // pred_check_branch
    %13 = sbr.rel (0) target = $region9
  $region8: #{tpu_custom_call.1} parent=0 // pred_region
    _
  $region9: #{tpu_custom_call.1} parent=0 // pred_fallthru
    _
  // Predicated region
  $region10: #{tpu_custom_call.1} parent=0 // pred_check
    _
  $region11: #{tpu_custom_call.1} parent=0 // pred_check_branch
    %15 = sbr.rel (0) target = $region13
  $region12: #{tpu_custom_call.1} parent=0 // pred_region
    _
  $region13: #{tpu_custom_call.1} parent=0 // pred_fallthru
    _
  // Predicated region
  $region14: #{tpu_custom_call.1} parent=0 // pred_check
    _
  $region15: #{tpu_custom_call.1} parent=0 // pred_check_branch
    %17 = sbr.rel (0) target = $region17
  $region16: #{tpu_custom_call.1} parent=0 // pred_region
    _
  $region17: #{tpu_custom_call.1} parent=0 // pred_fallthru
    _
  // Predicated region
  $region18: #{tpu_custom_call.1} parent=0 // pred_check
    _
  $region19: #{tpu_custom_call.1} parent=0 // pred_check_branch
    %19 = sbr.rel (0) target = $region21
  $region20: #{tpu_custom_call.1} parent=0 // pred_region
    _
  $region21: #{tpu_custom_call.1} parent=0 // pred_fallthru
    _
  %v21 = vld [vmem:[%s0] sm:$0xf]
  %v22 = vld [vmem:[%s0 + $0x4] sm:$0xf]
  %v23 = vld [vmem:[%s0 + $0x8] sm:$0xf]
  %v24 = vld [vmem:[%s0 + $0xc] sm:$0xf]
  %v25 = vld [vmem:[%s0 + $0x10] sm:$0xf]
  %v26 = vld [vmem:[%s0 + $0x14] sm:$0xf]
  %v27 = vld [vmem:[%s0 + $0x18] sm:$0xf]
  %v28 = vld [vmem:[%s0 + $0x1c] sm:$0xf]
  %v29 = vld [vmem:[%s0 + $0x20] sm:$0xf]
  %v30 = vld [vmem:[%s0 + $0x24] sm:$0xf]
  %v31 = vld [vmem:[%s0 + $0x28] sm:$0xf]
  %v32 = vld [vmem:[%s0 + $0x2c] sm:$0xf]
  %v33 = vld [vmem:[%s0 + $0x30] sm:$0xf]
  %v34 = vld [vmem:[%s0 + $0x34] sm:$0xf]
  %v35 = vld [vmem:[%s0 + $0x38] sm:$0xf]
  %v36 = vld [vmem:[%s0 + $0x3c] sm:$0xf]
  %v37 = vld [vmem:[%s0 + $0x40] sm:$0xf]
  %v38 = vld [vmem:[%s0 + $0x44] sm:$0xf]
  %v39 = vld [vmem:[%s0 + $0x48] sm:$0xf]
  %v40 = vld [vmem:[%s0 + $0x4c] sm:$0xf]
  %v41 = vld [vmem:[%s0 + $0x50] sm:$0xf]
  %v42 = vld [vmem:[%s0 + $0x54] sm:$0xf]
  %v43 = vld [vmem:[%s0 + $0x58] sm:$0xf]
  %v44 = vld [vmem:[%s0 + $0x5c] sm:$0xf]
  %v45 = vld [vmem:[%s0 + $0x60] sm:$0xf]
  %v46 = vld [vmem:[%s0 + $0x64] sm:$0xf]
  %v47 = vld [vmem:[%s0 + $0x68] sm:$0xf]
  %v48 = vld [vmem:[%s0 + $0x6c] sm:$0xf]
  %v49 = vld [vmem:[%s0 + $0x70] sm:$0xf]
  %v50 = vld [vmem:[%s0 + $0x74] sm:$0xf]
  %v51 = vld [vmem:[%s0 + $0x78] sm:$0xf]
  %v52 = vld [vmem:[%s0 + $0x7c] sm:$0xf]
  %v53 = vld [vmem:[%s0 + $0x80] sm:$0xf]
  %v54 = vld [vmem:[%s0 + $0x84] sm:$0xf]
  %v55 = vld [vmem:[%s0 + $0x88] sm:$0xf]
  %v56 = vld [vmem:[%s0 + $0x8c] sm:$0xf]
  %v57 = vld [vmem:[%s0 + $0x90] sm:$0xf]
  %v58 = vld [vmem:[%s0 + $0x94] sm:$0xf]
  %v59 = vld [vmem:[%s0 + $0x98] sm:$0xf]
  %v60 = vld [vmem:[%s0 + $0x9c] sm:$0xf]
  %v61 = vld [vmem:[%s0 + $0xa0] sm:$0xf]
  %v62 = vld [vmem:[%s0 + $0xa4] sm:$0xf]
  %v63 = vld [vmem:[%s0 + $0xa8] sm:$0xf]
  %v64 = vld [vmem:[%s0 + $0xac] sm:$0xf]
  %v65 = vld [vmem:[%s0 + $0xb0] sm:$0xf]
  %v66 = vld [vmem:[%s0 + $0xb4] sm:$0xf]
  %v67 = vld [vmem:[%s0 + $0xb8] sm:$0xf]
  %v68 = vld [vmem:[%s0 + $0xbc] sm:$0xf]
  %v69 = vld [vmem:[%s0 + $0xc0] sm:$0xf]
  %v70 = vld [vmem:[%s0 + $0xc4] sm:$0xf]
  %v71 = vld [vmem:[%s0 + $0xc8] sm:$0xf]
  %v72 = vld [vmem:[%s0 + $0xcc] sm:$0xf]
  %v73 = vld [vmem:[%s0 + $0xd0] sm:$0xf]
  %v74 = vld [vmem:[%s0 + $0xd4] sm:$0xf]
  %v75 = vld [vmem:[%s0 + $0xd8] sm:$0xf]
  %v76 = vld [vmem:[%s0 + $0xdc] sm:$0xf]
  %v77 = vld [vmem:[%s0 + $0xe0] sm:$0xf]
  %v78 = vld [vmem:[%s0 + $0xe4] sm:$0xf]
  %v79 = vld [vmem:[%s0 + $0xe8] sm:$0xf]
  %v80 = vld [vmem:[%s0 + $0xec] sm:$0xf]
  %v81 = vld [vmem:[%s0 + $0xf0] sm:$0xf]
  %v82 = vld [vmem:[%s0 + $0xf4] sm:$0xf]
  %v83 = vld [vmem:[%s0 + $0xf8] sm:$0xf]
  %v84 = vld [vmem:[%s0 + $0xfc] sm:$0xf]
  %v85 = vld [vmem:[%s1] sm:$0xf]
  %v86 = vld [vmem:[%s1 + $0x4] sm:$0xf]
  %v87 = vld [vmem:[%s1 + $0x8] sm:$0xf]
  %v88 = vld [vmem:[%s1 + $0xc] sm:$0xf]
  %v89 = vld [vmem:[%s2] sm:$0x1]
  %v91 = vlaneseq
  %v92 = vshrl.u32 %v91, 7
  %v93 = vsub.s32 0, %v92
  %v94 = vrot.slane %v89, %v93
  %v160 = vunpack.c.l.b16 %v21
  %v161 = vunpack.c.l.b16 %v22
  %v162 = vunpack.c.l.b16 %v23
  %v163 = vunpack.c.l.b16 %v24
  %v164 = vunpack.c.l.b16 %v25
  %v165 = vunpack.c.l.b16 %v26
  %v166 = vunpack.c.l.b16 %v27
  %v167 = vunpack.c.l.b16 %v28
  %v168 = vunpack.c.l.b16 %v29
  %v169 = vunpack.c.l.b16 %v30
  %v170 = vunpack.c.l.b16 %v31
  %v171 = vunpack.c.l.b16 %v32
  %v172 = vunpack.c.l.b16 %v33
  %v173 = vunpack.c.l.b16 %v34
  %v174 = vunpack.c.l.b16 %v35
  %v175 = vunpack.c.l.b16 %v36
  %v176 = vunpack.c.l.b16 %v37
  %v177 = vunpack.c.l.b16 %v38
  %v178 = vunpack.c.l.b16 %v39
  %v179 = vunpack.c.l.b16 %v40
  %v180 = vunpack.c.l.b16 %v41
  %v181 = vunpack.c.l.b16 %v42
  %v182 = vunpack.c.l.b16 %v43
  %v183 = vunpack.c.l.b16 %v44
  %v184 = vunpack.c.l.b16 %v45
  %v185 = vunpack.c.l.b16 %v46
  %v186 = vunpack.c.l.b16 %v47
  %v187 = vunpack.c.l.b16 %v48
  %v188 = vunpack.c.l.b16 %v49
  %v189 = vunpack.c.l.b16 %v50
  %v190 = vunpack.c.l.b16 %v51
  %v191 = vunpack.c.l.b16 %v52
  %v192 = vunpack.c.l.b16 %v53
  %v193 = vunpack.c.l.b16 %v54
  %v194 = vunpack.c.l.b16 %v55
  %v195 = vunpack.c.l.b16 %v56
  %v196 = vunpack.c.l.b16 %v57
  %v197 = vunpack.c.l.b16 %v58
  %v198 = vunpack.c.l.b16 %v59
  %v199 = vunpack.c.l.b16 %v60
  %v200 = vunpack.c.l.b16 %v61
  %v201 = vunpack.c.l.b16 %v62
  %v202 = vunpack.c.l.b16 %v63
  %v203 = vunpack.c.l.b16 %v64
  %v204 = vunpack.c.l.b16 %v65
  %v205 = vunpack.c.l.b16 %v66
  %v206 = vunpack.c.l.b16 %v67
  %v207 = vunpack.c.l.b16 %v68
  %v208 = vunpack.c.l.b16 %v69
  %v209 = vunpack.c.l.b16 %v70
  %v210 = vunpack.c.l.b16 %v71
  %v211 = vunpack.c.l.b16 %v72
  %v212 = vunpack.c.l.b16 %v73
  %v213 = vunpack.c.l.b16 %v74
  %v214 = vunpack.c.l.b16 %v75
  %v215 = vunpack.c.l.b16 %v76
  %v216 = vunpack.c.l.b16 %v77
  %v217 = vunpack.c.l.b16 %v78
  %v218 = vunpack.c.l.b16 %v79
  %v219 = vunpack.c.l.b16 %v80
  %v220 = vunpack.c.l.b16 %v81
  %v221 = vunpack.c.l.b16 %v82
  %v222 = vunpack.c.l.b16 %v83
  %v223 = vunpack.c.l.b16 %v84
  %v224 = vpack.c.b16 %v161, %v160
  %v225 = vpack.c.b16 %v163, %v162
  %v226 = vpack.c.b16 %v165, %v164
  %v227 = vpack.c.b16 %v167, %v166
  %v228 = vpack.c.b16 %v169, %v168
  %v229 = vpack.c.b16 %v171, %v170
  %v230 = vpack.c.b16 %v173, %v172
  %v231 = vpack.c.b16 %v175, %v174
  %v232 = vpack.c.b16 %v177, %v176
  %v233 = vpack.c.b16 %v179, %v178
  %v234 = vpack.c.b16 %v181, %v180
  %v235 = vpack.c.b16 %v183, %v182
  %v236 = vpack.c.b16 %v185, %v184
  %v237 = vpack.c.b16 %v187, %v186
  %v238 = vpack.c.b16 %v189, %v188
  %v239 = vpack.c.b16 %v191, %v190
  %v240 = vpack.c.b16 %v193, %v192
  %v241 = vpack.c.b16 %v195, %v194
  %v242 = vpack.c.b16 %v197, %v196
  %v243 = vpack.c.b16 %v199, %v198
  %v244 = vpack.c.b16 %v201, %v200
  %v245 = vpack.c.b16 %v203, %v202
  %v246 = vpack.c.b16 %v205, %v204
  %v247 = vpack.c.b16 %v207, %v206
  %v248 = vpack.c.b16 %v209, %v208
  %v249 = vpack.c.b16 %v211, %v210
  %v250 = vpack.c.b16 %v213, %v212
  %v251 = vpack.c.b16 %v215, %v214
  %v252 = vpack.c.b16 %v217, %v216
  %v253 = vpack.c.b16 %v219, %v218
  %v254 = vpack.c.b16 %v221, %v220
  %v255 = vpack.c.b16 %v223, %v222
  %v260 = vunpack.c.l.b16 %v85
  %v261 = vunpack.c.l.b16 %v86
  %v262 = vunpack.c.l.b16 %v87
  %v263 = vunpack.c.l.b16 %v88
  %v264 = vpack.c.b16 %v261, %v260
  %v265 = vpack.c.b16 %v263, %v262
  %vm268 = vcmask 261120
  %v270 = vsel %vm268, %v224, 0
  %v273 = vsel %vm268, %v225, 0
  %v276 = vsel %vm268, %v226, 0
  %v279 = vsel %vm268, %v227, 0
  %v282 = vsel %vm268, %v228, 0
  %v285 = vsel %vm268, %v229, 0
  %v288 = vsel %vm268, %v230, 0
  %v291 = vsel %vm268, %v231, 0
  %v294 = vsel %vm268, %v232, 0
  %v297 = vsel %vm268, %v233, 0
  %v300 = vsel %vm268, %v234, 0
  %v303 = vsel %vm268, %v235, 0
  %v306 = vsel %vm268, %v236, 0
  %v309 = vsel %vm268, %v237, 0
  %v312 = vsel %vm268, %v238, 0
  %v315 = vsel %vm268, %v239, 0
  %v318 = vsel %vm268, %v240, 0
  %v321 = vsel %vm268, %v241, 0
  %v324 = vsel %vm268, %v242, 0
  %v327 = vsel %vm268, %v243, 0
  %v330 = vsel %vm268, %v244, 0
  %v333 = vsel %vm268, %v245, 0
  %v336 = vsel %vm268, %v246, 0
  %v339 = vsel %vm268, %v247, 0
  %v342 = vsel %vm268, %v248, 0
  %v345 = vsel %vm268, %v249, 0
  %v348 = vsel %vm268, %v250, 0
  %v351 = vsel %vm268, %v251, 0
  %v354 = vsel %vm268, %v252, 0
  %v357 = vsel %vm268, %v253, 0
  %v360 = vsel %vm268, %v254, 0
  %v363 = vsel %vm268, %v255, 0
  %365 = vmatprep.subr.bf16.mxu0 0
  %366 = vmatpush1.bf16.msra.mxu0 %v264
  %367 = vmatprep.subr.bf16.mxu0 0
  %368 = vmatpush1.bf16.msra.mxu0 %v265
  %369 = vmatprep.subr.bf16.mxu0 0
  %370 = vmatpush1.bf16.msra.mxu0 0
  %371 = vmatprep.subr.bf16.mxu0 0
  %372 = vmatpush1.bf16.msra.mxu0 0
  %373 = vmatprep.subr.bf16.mxu0 0
  %374 = vmatpush1.bf16.msra.mxu0 0
  %375 = vmatprep.subr.bf16.mxu0 0
  %376 = vmatpush1.bf16.msra.mxu0 0
  %377 = vmatprep.subr.bf16.mxu0 0
  %378 = vmatpush1.bf16.msra.mxu0 0
  %379 = vmatprep.subr.bf16.mxu0 0
  %380 = vmatpush1.bf16.msra.mxu0 0
  %381 = vmatprep.subr.bf16.mxu0 0
  %382 = vmatpush1.bf16.msra.mxu0 0
  %383 = vmatprep.subr.bf16.mxu0 0
  %384 = vmatpush1.bf16.msra.mxu0 0
  %385 = vmatprep.subr.bf16.mxu0 0
  %386 = vmatpush1.bf16.msra.mxu0 0
  %387 = vmatprep.subr.bf16.mxu0 0
  %388 = vmatpush1.bf16.msra.mxu0 0
  %389 = vmatprep.subr.bf16.mxu0 0
  %390 = vmatpush1.bf16.msra.mxu0 0
  %391 = vmatprep.subr.bf16.mxu0 0
  %392 = vmatpush1.bf16.msra.mxu0 0
  %393 = vmatprep.subr.bf16.mxu0 0
  %394 = vmatpush1.bf16.msra.mxu0 0
  %395 = vmatprep.subr.bf16.mxu0 0
  %396 = vmatpush1.bf16.msra.mxu0 0
  %397 = vmatprep.mubr.bf16.mxu0 0
  %398 = vmatmul.mubr.bf16.gmra.mrb[0].mxu0 %v270
  %v399 = vpop.f32.mrb[0].mxu0
  %v400 = vadd.f32 %v94, %v399
  %v401 = vpop.f32.mrb[0].mxu0
  %v402 = vpop.f32.mrb[0].mxu0
  %v403 = vadd.f32 %v94, %v402
  %v404 = vpop.f32.mrb[0].mxu0
  %405 = vmatprep.mubr.bf16.mxu0 0
  %406 = vmatmul.mubr.bf16.gmra.mrb[0].mxu0 %v273
  %v407 = vpop.f32.mrb[0].mxu0
  %v408 = vadd.f32 %v94, %v407
  %v409 = vpop.f32.mrb[0].mxu0
  %v410 = vpop.f32.mrb[0].mxu0
  %v411 = vadd.f32 %v94, %v410
  %v412 = vpop.f32.mrb[0].mxu0
  %413 = vmatprep.mubr.bf16.mxu0 0
  %414 = vmatmul.mubr.bf16.gmra.mrb[0].mxu0 %v276
  %v415 = vpop.f32.mrb[0].mxu0
  %v416 = vadd.f32 %v94, %v415
  %v417 = vpop.f32.mrb[0].mxu0
  %v418 = vpop.f32.mrb[0].mxu0
  %v419 = vadd.f32 %v94, %v418
  %v420 = vpop.f32.mrb[0].mxu0
  %421 = vmatprep.mubr.bf16.mxu0 0
  %422 = vmatmul.mubr.bf16.gmra.mrb[0].mxu0 %v279
  %v423 = vpop.f32.mrb[0].mxu0
  %v424 = vadd.f32 %v94, %v423
  %v425 = vpop.f32.mrb[0].mxu0
  %v426 = vpop.f32.mrb[0].mxu0
  %v427 = vadd.f32 %v94, %v426
  %v428 = vpop.f32.mrb[0].mxu0
  %429 = vmatprep.mubr.bf16.mxu0 0
  %430 = vmatmul.mubr.bf16.gmra.mrb[0].mxu0 %v282
  %v431 = vpop.f32.mrb[0].mxu0
  %v432 = vadd.f32 %v94, %v431
  %v433 = vpop.f32.mrb[0].mxu0
  %v434 = vpop.f32.mrb[0].mxu0
  %v435 = vadd.f32 %v94, %v434
  %v436 = vpop.f32.mrb[0].mxu0
  %437 = vmatprep.mubr.bf16.mxu0 0
  %438 = vmatmul.mubr.bf16.gmra.mrb[0].mxu0 %v285
  %v439 = vpop.f32.mrb[0].mxu0
  %v440 = vadd.f32 %v94, %v439
  %v441 = vpop.f32.mrb[0].mxu0
  %v442 = vpop.f32.mrb[0].mxu0
  %v443 = vadd.f32 %v94, %v442
  %v444 = vpop.f32.mrb[0].mxu0
  %445 = vmatprep.mubr.bf16.mxu0 0
  %446 = vmatmul.mubr.bf16.gmra.mrb[0].mxu0 %v288
  %v447 = vpop.f32.mrb[0].mxu0
  %v448 = vadd.f32 %v94, %v447
  %v449 = vpop.f32.mrb[0].mxu0
  %v450 = vpop.f32.mrb[0].mxu0
  %v451 = vadd.f32 %v94, %v450
  %v452 = vpop.f32.mrb[0].mxu0
  %453 = vmatprep.mubr.bf16.mxu0 0
  %454 = vmatmul.mubr.bf16.gmra.mrb[0].mxu0 %v291
  %v455 = vpop.f32.mrb[0].mxu0
  %v456 = vadd.f32 %v94, %v455
  %v457 = vpop.f32.mrb[0].mxu0
  %v458 = vpop.f32.mrb[0].mxu0
  %v459 = vadd.f32 %v94, %v458
  %v460 = vpop.f32.mrb[0].mxu0
  %461 = vmatprep.mubr.bf16.mxu0 0
  %462 = vmatmul.mubr.bf16.gmra.mrb[0].mxu0 %v294
  %v463 = vpop.f32.mrb[0].mxu0
  %v464 = vadd.f32 %v94, %v463
  %v465 = vpop.f32.mrb[0].mxu0
  %v466 = vpop.f32.mrb[0].mxu0
  %v467 = vadd.f32 %v94, %v466
  %v468 = vpop.f32.mrb[0].mxu0
  %469 = vmatprep.mubr.bf16.mxu0 0
  %470 = vmatmul.mubr.bf16.gmra.mrb[0].mxu0 %v297
  %v471 = vpop.f32.mrb[0].mxu0
  %v472 = vadd.f32 %v94, %v471
  %v473 = vpop.f32.mrb[0].mxu0
  %v474 = vpop.f32.mrb[0].mxu0
  %v475 = vadd.f32 %v94, %v474
  %v476 = vpop.f32.mrb[0].mxu0
  %477 = vmatprep.mubr.bf16.mxu0 0
  %478 = vmatmul.mubr.bf16.gmra.mrb[0].mxu0 %v300
  %v479 = vpop.f32.mrb[0].mxu0
  %v480 = vadd.f32 %v94, %v479
  %v481 = vpop.f32.mrb[0].mxu0
  %v482 = vpop.f32.mrb[0].mxu0
  %v483 = vadd.f32 %v94, %v482
  %v484 = vpop.f32.mrb[0].mxu0
  %485 = vmatprep.mubr.bf16.mxu0 0
  %486 = vmatmul.mubr.bf16.gmra.mrb[0].mxu0 %v303
  %v487 = vpop.f32.mrb[0].mxu0
  %v488 = vadd.f32 %v94, %v487
  %v489 = vpop.f32.mrb[0].mxu0
  %v490 = vpop.f32.mrb[0].mxu0
  %v491 = vadd.f32 %v94, %v490
  %v492 = vpop.f32.mrb[0].mxu0
  %493 = vmatprep.mubr.bf16.mxu0 0
  %494 = vmatmul.mubr.bf16.gmra.mrb[0].mxu0 %v306
  %v495 = vpop.f32.mrb[0].mxu0
  %v496 = vadd.f32 %v94, %v495
  %v497 = vpop.f32.mrb[0].mxu0
  %v498 = vpop.f32.mrb[0].mxu0
  %v499 = vadd.f32 %v94, %v498
  %v500 = vpop.f32.mrb[0].mxu0
  %501 = vmatprep.mubr.bf16.mxu0 0
  %502 = vmatmul.mubr.bf16.gmra.mrb[0].mxu0 %v309
  %v503 = vpop.f32.mrb[0].mxu0
  %v504 = vadd.f32 %v94, %v503
  %v505 = vpop.f32.mrb[0].mxu0
  %v506 = vpop.f32.mrb[0].mxu0
  %v507 = vadd.f32 %v94, %v506
  %v508 = vpop.f32.mrb[0].mxu0
  %509 = vmatprep.mubr.bf16.mxu0 0
  %510 = vmatmul.mubr.bf16.gmra.mrb[0].mxu0 %v312
  %v511 = vpop.f32.mrb[0].mxu0
  %v512 = vadd.f32 %v94, %v511
  %v513 = vpop.f32.mrb[0].mxu0
  %v514 = vpop.f32.mrb[0].mxu0
  %v515 = vadd.f32 %v94, %v514
  %v516 = vpop.f32.mrb[0].mxu0
  %517 = vmatprep.mubr.bf16.mxu0 0
  %518 = vmatmul.mubr.bf16.gmra.mrb[0].mxu0 %v315
  %v519 = vpop.f32.mrb[0].mxu0
  %v520 = vadd.f32 %v94, %v519
  %v521 = vpop.f32.mrb[0].mxu0
  %v522 = vpop.f32.mrb[0].mxu0
  %v523 = vadd.f32 %v94, %v522
  %v524 = vpop.f32.mrb[0].mxu0
  %525 = vmatprep.mubr.bf16.mxu0 0
  %526 = vmatmul.mubr.bf16.gmra.mrb[0].mxu0 %v318
  %v527 = vpop.f32.mrb[0].mxu0
  %v528 = vadd.f32 %v94, %v527
  %v529 = vpop.f32.mrb[0].mxu0
  %v530 = vpop.f32.mrb[0].mxu0
  %v531 = vadd.f32 %v94, %v530
  %v532 = vpop.f32.mrb[0].mxu0
  %533 = vmatprep.mubr.bf16.mxu0 0
  %534 = vmatmul.mubr.bf16.gmra.mrb[0].mxu0 %v321
  %v535 = vpop.f32.mrb[0].mxu0
  %v536 = vadd.f32 %v94, %v535
  %v537 = vpop.f32.mrb[0].mxu0
  %v538 = vpop.f32.mrb[0].mxu0
  %v539 = vadd.f32 %v94, %v538
  %v540 = vpop.f32.mrb[0].mxu0
  %541 = vmatprep.mubr.bf16.mxu0 0
  %542 = vmatmul.mubr.bf16.gmra.mrb[0].mxu0 %v324
  %v543 = vpop.f32.mrb[0].mxu0
  %v544 = vadd.f32 %v94, %v543
  %v545 = vpop.f32.mrb[0].mxu0
  %v546 = vpop.f32.mrb[0].mxu0
  %v547 = vadd.f32 %v94, %v546
  %v548 = vpop.f32.mrb[0].mxu0
  %549 = vmatprep.mubr.bf16.mxu0 0
  %550 = vmatmul.mubr.bf16.gmra.mrb[0].mxu0 %v327
  %v551 = vpop.f32.mrb[0].mxu0
  %v552 = vadd.f32 %v94, %v551
  %v553 = vpop.f32.mrb[0].mxu0
  %v554 = vpop.f32.mrb[0].mxu0
  %v555 = vadd.f32 %v94, %v554
  %v556 = vpop.f32.mrb[0].mxu0
  %557 = vmatprep.mubr.bf16.mxu0 0
  %558 = vmatmul.mubr.bf16.gmra.mrb[0].mxu0 %v330
  %v559 = vpop.f32.mrb[0].mxu0
  %v560 = vadd.f32 %v94, %v559
  %v561 = vpop.f32.mrb[0].mxu0
  %v562 = vpop.f32.mrb[0].mxu0
  %v563 = vadd.f32 %v94, %v562
  %v564 = vpop.f32.mrb[0].mxu0
  %565 = vmatprep.mubr.bf16.mxu0 0
  %566 = vmatmul.mubr.bf16.gmra.mrb[0].mxu0 %v333
  %v567 = vpop.f32.mrb[0].mxu0
  %v568 = vadd.f32 %v94, %v567
  %v569 = vpop.f32.mrb[0].mxu0
  %v570 = vpop.f32.mrb[0].mxu0
  %v571 = vadd.f32 %v94, %v570
  %v572 = vpop.f32.mrb[0].mxu0
  %573 = vmatprep.mubr.bf16.mxu0 0
  %574 = vmatmul.mubr.bf16.gmra.mrb[0].mxu0 %v336
  %v575 = vpop.f32.mrb[0].mxu0
  %v576 = vadd.f32 %v94, %v575
  %v577 = vpop.f32.mrb[0].mxu0
  %v578 = vpop.f32.mrb[0].mxu0
  %v579 = vadd.f32 %v94, %v578
  %v580 = vpop.f32.mrb[0].mxu0
  %581 = vmatprep.mubr.bf16.mxu0 0
  %582 = vmatmul.mubr.bf16.gmra.mrb[0].mxu0 %v339
  %v583 = vpop.f32.mrb[0].mxu0
  %v584 = vadd.f32 %v94, %v583
  %v585 = vpop.f32.mrb[0].mxu0
  %v586 = vpop.f32.mrb[0].mxu0
  %v587 = vadd.f32 %v94, %v586
  %v588 = vpop.f32.mrb[0].mxu0
  %589 = vmatprep.mubr.bf16.mxu0 0
  %590 = vmatmul.mubr.bf16.gmra.mrb[0].mxu0 %v342
  %v591 = vpop.f32.mrb[0].mxu0
  %v592 = vadd.f32 %v94, %v591
  %v593 = vpop.f32.mrb[0].mxu0
  %v594 = vpop.f32.mrb[0].mxu0
  %v595 = vadd.f32 %v94, %v594
  %v596 = vpop.f32.mrb[0].mxu0
  %597 = vmatprep.mubr.bf16.mxu0 0
  %598 = vmatmul.mubr.bf16.gmra.mrb[0].mxu0 %v345
  %v599 = vpop.f32.mrb[0].mxu0
  %v600 = vadd.f32 %v94, %v599
  %v601 = vpop.f32.mrb[0].mxu0
  %v602 = vpop.f32.mrb[0].mxu0
  %v603 = vadd.f32 %v94, %v602
  %v604 = vpop.f32.mrb[0].mxu0
  %605 = vmatprep.mubr.bf16.mxu0 0
  %606 = vmatmul.mubr.bf16.gmra.mrb[0].mxu0 %v348
  %v607 = vpop.f32.mrb[0].mxu0
  %v608 = vadd.f32 %v94, %v607
  %v609 = vpop.f32.mrb[0].mxu0
  %v610 = vpop.f32.mrb[0].mxu0
  %v611 = vadd.f32 %v94, %v610
  %v612 = vpop.f32.mrb[0].mxu0
  %613 = vmatprep.mubr.bf16.mxu0 0
  %614 = vmatmul.mubr.bf16.gmra.mrb[0].mxu0 %v351
  %v615 = vpop.f32.mrb[0].mxu0
  %v616 = vadd.f32 %v94, %v615
  %v617 = vpop.f32.mrb[0].mxu0
  %v618 = vpop.f32.mrb[0].mxu0
  %v619 = vadd.f32 %v94, %v618
  %v620 = vpop.f32.mrb[0].mxu0
  %621 = vmatprep.mubr.bf16.mxu0 0
  %622 = vmatmul.mubr.bf16.gmra.mrb[0].mxu0 %v354
  %v623 = vpop.f32.mrb[0].mxu0
  %v624 = vadd.f32 %v94, %v623
  %v625 = vpop.f32.mrb[0].mxu0
  %v626 = vpop.f32.mrb[0].mxu0
  %v627 = vadd.f32 %v94, %v626
  %v628 = vpop.f32.mrb[0].mxu0
  %629 = vmatprep.mubr.bf16.mxu0 0
  %630 = vmatmul.mubr.bf16.gmra.mrb[0].mxu0 %v357
  %v631 = vpop.f32.mrb[0].mxu0
  %v632 = vadd.f32 %v94, %v631
  %v633 = vpop.f32.mrb[0].mxu0
  %v634 = vpop.f32.mrb[0].mxu0
  %v635 = vadd.f32 %v94, %v634
  %v636 = vpop.f32.mrb[0].mxu0
  %637 = vmatprep.mubr.bf16.mxu0 0
  %638 = vmatmul.mubr.bf16.gmra.mrb[0].mxu0 %v360
  %v639 = vpop.f32.mrb[0].mxu0
  %v640 = vadd.f32 %v94, %v639
  %v641 = vpop.f32.mrb[0].mxu0
  %v642 = vpop.f32.mrb[0].mxu0
  %v643 = vadd.f32 %v94, %v642
  %v644 = vpop.f32.mrb[0].mxu0
  %645 = vmatprep.mubr.bf16.mxu0 0
  %646 = vmatmul.mubr.bf16.gmra.mrb[0].mxu0 %v363
  %v647 = vpop.f32.mrb[0].mxu0
  %v648 = vadd.f32 %v94, %v647
  %v649 = vpop.f32.mrb[0].mxu0
  %v650 = vpop.f32.mrb[0].mxu0
  %v651 = vadd.f32 %v94, %v650
  %v652 = vpop.f32.mrb[0].mxu0
  %653 = vdwg.mxu0
  %v654 = vmax.f32 %v400, 0.0
  %v655 = vmax.f32 %v403, 0.0
  %v656 = vmax.f32 %v408, 0.0
  %v657 = vmax.f32 %v411, 0.0
  %v658 = vmax.f32 %v416, 0.0
  %v659 = vmax.f32 %v419, 0.0
  %v660 = vmax.f32 %v424, 0.0
  %v661 = vmax.f32 %v427, 0.0
  %v662 = vmax.f32 %v432, 0.0
  %v663 = vmax.f32 %v435, 0.0
  %v664 = vmax.f32 %v440, 0.0
  %v665 = vmax.f32 %v443, 0.0
  %v666 = vmax.f32 %v448, 0.0
  %v667 = vmax.f32 %v451, 0.0
  %v668 = vmax.f32 %v456, 0.0
  %v669 = vmax.f32 %v459, 0.0
  %v670 = vmax.f32 %v464, 0.0
  %v671 = vmax.f32 %v467, 0.0
  %v672 = vmax.f32 %v472, 0.0
  %v673 = vmax.f32 %v475, 0.0
  %v674 = vmax.f32 %v480, 0.0
  %v675 = vmax.f32 %v483, 0.0
  %v676 = vmax.f32 %v488, 0.0
  %v677 = vmax.f32 %v491, 0.0
  %v678 = vmax.f32 %v496, 0.0
  %v679 = vmax.f32 %v499, 0.0
  %v680 = vmax.f32 %v504, 0.0
  %v681 = vmax.f32 %v507, 0.0
  %v682 = vmax.f32 %v512, 0.0
  %v683 = vmax.f32 %v515, 0.0
  %v684 = vmax.f32 %v520, 0.0
  %v685 = vmax.f32 %v523, 0.0
  %v686 = vmax.f32 %v528, 0.0
  %v687 = vmax.f32 %v531, 0.0
  %v688 = vmax.f32 %v536, 0.0
  %v689 = vmax.f32 %v539, 0.0
  %v690 = vmax.f32 %v544, 0.0
  %v691 = vmax.f32 %v547, 0.0
  %v692 = vmax.f32 %v552, 0.0
  %v693 = vmax.f32 %v555, 0.0
  %v694 = vmax.f32 %v560, 0.0
  %v695 = vmax.f32 %v563, 0.0
  %v696 = vmax.f32 %v568, 0.0
  %v697 = vmax.f32 %v571, 0.0
  %v698 = vmax.f32 %v576, 0.0
  %v699 = vmax.f32 %v579, 0.0
  %v700 = vmax.f32 %v584, 0.0
  %v701 = vmax.f32 %v587, 0.0
  %v702 = vmax.f32 %v592, 0.0
  %v703 = vmax.f32 %v595, 0.0
  %v704 = vmax.f32 %v600, 0.0
  %v705 = vmax.f32 %v603, 0.0
  %v706 = vmax.f32 %v608, 0.0
  %v707 = vmax.f32 %v611, 0.0
  %v708 = vmax.f32 %v616, 0.0
  %v709 = vmax.f32 %v619, 0.0
  %v710 = vmax.f32 %v624, 0.0
  %v711 = vmax.f32 %v627, 0.0
  %v712 = vmax.f32 %v632, 0.0
  %v713 = vmax.f32 %v635, 0.0
  %v714 = vmax.f32 %v640, 0.0
  %v715 = vmax.f32 %v643, 0.0
  %v716 = vmax.f32 %v648, 0.0
  %v717 = vmax.f32 %v651, 0.0
  %vm718 = vcmp.ne.f32.partialorder %v400, %v400
  %vm719 = vcmp.ne.f32.partialorder %v403, %v403
  %vm720 = vcmp.ne.f32.partialorder %v408, %v408
  %vm721 = vcmp.ne.f32.partialorder %v411, %v411
  %vm722 = vcmp.ne.f32.partialorder %v416, %v416
  %vm723 = vcmp.ne.f32.partialorder %v419, %v419
  %vm724 = vcmp.ne.f32.partialorder %v424, %v424
  %vm725 = vcmp.ne.f32.partialorder %v427, %v427
  %vm726 = vcmp.ne.f32.partialorder %v432, %v432
  %vm727 = vcmp.ne.f32.partialorder %v435, %v435
  %vm728 = vcmp.ne.f32.partialorder %v440, %v440
  %vm729 = vcmp.ne.f32.partialorder %v443, %v443
  %vm730 = vcmp.ne.f32.partialorder %v448, %v448
  %vm731 = vcmp.ne.f32.partialorder %v451, %v451
  %vm732 = vcmp.ne.f32.partialorder %v456, %v456
  %vm733 = vcmp.ne.f32.partialorder %v459, %v459
  %vm734 = vcmp.ne.f32.partialorder %v464, %v464
  %vm735 = vcmp.ne.f32.partialorder %v467, %v467
  %vm736 = vcmp.ne.f32.partialorder %v472, %v472
  %vm737 = vcmp.ne.f32.partialorder %v475, %v475
  %vm738 = vcmp.ne.f32.partialorder %v480, %v480
  %vm739 = vcmp.ne.f32.partialorder %v483, %v483
  %vm740 = vcmp.ne.f32.partialorder %v488, %v488
  %vm741 = vcmp.ne.f32.partialorder %v491, %v491
  %vm742 = vcmp.ne.f32.partialorder %v496, %v496
  %vm743 = vcmp.ne.f32.partialorder %v499, %v499
  %vm744 = vcmp.ne.f32.partialorder %v504, %v504
  %vm745 = vcmp.ne.f32.partialorder %v507, %v507
  %vm746 = vcmp.ne.f32.partialorder %v512, %v512
  %vm747 = vcmp.ne.f32.partialorder %v515, %v515
  %vm748 = vcmp.ne.f32.partialorder %v520, %v520
  %vm749 = vcmp.ne.f32.partialorder %v523, %v523
  %vm750 = vcmp.ne.f32.partialorder %v528, %v528
  %vm751 = vcmp.ne.f32.partialorder %v531, %v531
  %vm752 = vcmp.ne.f32.partialorder %v536, %v536
  %vm753 = vcmp.ne.f32.partialorder %v539, %v539
  %vm754 = vcmp.ne.f32.partialorder %v544, %v544
  %vm755 = vcmp.ne.f32.partialorder %v547, %v547
  %vm756 = vcmp.ne.f32.partialorder %v552, %v552
  %vm757 = vcmp.ne.f32.partialorder %v555, %v555
  %vm758 = vcmp.ne.f32.partialorder %v560, %v560
  %vm759 = vcmp.ne.f32.partialorder %v563, %v563
  %vm760 = vcmp.ne.f32.partialorder %v568, %v568
  %vm761 = vcmp.ne.f32.partialorder %v571, %v571
  %vm762 = vcmp.ne.f32.partialorder %v576, %v576
  %vm763 = vcmp.ne.f32.partialorder %v579, %v579
  %vm764 = vcmp.ne.f32.partialorder %v584, %v584
  %vm765 = vcmp.ne.f32.partialorder %v587, %v587
  %vm766 = vcmp.ne.f32.partialorder %v592, %v592
  %vm767 = vcmp.ne.f32.partialorder %v595, %v595
  %vm768 = vcmp.ne.f32.partialorder %v600, %v600
  %vm769 = vcmp.ne.f32.partialorder %v603, %v603
  %vm770 = vcmp.ne.f32.partialorder %v608, %v608
  %vm771 = vcmp.ne.f32.partialorder %v611, %v611
  %vm772 = vcmp.ne.f32.partialorder %v616, %v616
  %vm773 = vcmp.ne.f32.partialorder %v619, %v619
  %vm774 = vcmp.ne.f32.partialorder %v624, %v624
  %vm775 = vcmp.ne.f32.partialorder %v627, %v627
  %vm776 = vcmp.ne.f32.partialorder %v632, %v632
  %vm777 = vcmp.ne.f32.partialorder %v635, %v635
  %vm778 = vcmp.ne.f32.partialorder %v640, %v640
  %vm779 = vcmp.ne.f32.partialorder %v643, %v643
  %vm780 = vcmp.ne.f32.partialorder %v648, %v648
  %vm781 = vcmp.ne.f32.partialorder %v651, %v651
  %v782 = vadd.f32 %v400, 0.0
  %v783 = vadd.f32 %v403, 0.0
  %v784 = vadd.f32 %v408, 0.0
  %v785 = vadd.f32 %v411, 0.0
  %v786 = vadd.f32 %v416, 0.0
  %v787 = vadd.f32 %v419, 0.0
  %v788 = vadd.f32 %v424, 0.0
  %v789 = vadd.f32 %v427, 0.0
  %v790 = vadd.f32 %v432, 0.0
  %v791 = vadd.f32 %v435, 0.0
  %v792 = vadd.f32 %v440, 0.0
  %v793 = vadd.f32 %v443, 0.0
  %v794 = vadd.f32 %v448, 0.0
  %v795 = vadd.f32 %v451, 0.0
  %v796 = vadd.f32 %v456, 0.0
  %v797 = vadd.f32 %v459, 0.0
  %v798 = vadd.f32 %v464, 0.0
  %v799 = vadd.f32 %v467, 0.0
  %v800 = vadd.f32 %v472, 0.0
  %v801 = vadd.f32 %v475, 0.0
  %v802 = vadd.f32 %v480, 0.0
  %v803 = vadd.f32 %v483, 0.0
  %v804 = vadd.f32 %v488, 0.0
  %v805 = vadd.f32 %v491, 0.0
  %v806 = vadd.f32 %v496, 0.0
  %v807 = vadd.f32 %v499, 0.0
  %v808 = vadd.f32 %v504, 0.0
  %v809 = vadd.f32 %v507, 0.0
  %v810 = vadd.f32 %v512, 0.0
  %v811 = vadd.f32 %v515, 0.0
  %v812 = vadd.f32 %v520, 0.0
  %v813 = vadd.f32 %v523, 0.0
  %v814 = vadd.f32 %v528, 0.0
  %v815 = vadd.f32 %v531, 0.0
  %v816 = vadd.f32 %v536, 0.0
  %v817 = vadd.f32 %v539, 0.0
  %v818 = vadd.f32 %v544, 0.0
  %v819 = vadd.f32 %v547, 0.0
  %v820 = vadd.f32 %v552, 0.0
  %v821 = vadd.f32 %v555, 0.0
  %v822 = vadd.f32 %v560, 0.0
  %v823 = vadd.f32 %v563, 0.0
  %v824 = vadd.f32 %v568, 0.0
  %v825 = vadd.f32 %v571, 0.0
  %v826 = vadd.f32 %v576, 0.0
  %v827 = vadd.f32 %v579, 0.0
  %v828 = vadd.f32 %v584, 0.0
  %v829 = vadd.f32 %v587, 0.0
  %v830 = vadd.f32 %v592, 0.0
  %v831 = vadd.f32 %v595, 0.0
  %v832 = vadd.f32 %v600, 0.0
  %v833 = vadd.f32 %v603, 0.0
  %v834 = vadd.f32 %v608, 0.0
  %v835 = vadd.f32 %v611, 0.0
  %v836 = vadd.f32 %v616, 0.0
  %v837 = vadd.f32 %v619, 0.0
  %v838 = vadd.f32 %v624, 0.0
  %v839 = vadd.f32 %v627, 0.0
  %v840 = vadd.f32 %v632, 0.0
  %v841 = vadd.f32 %v635, 0.0
  %v842 = vadd.f32 %v640, 0.0
  %v843 = vadd.f32 %v643, 0.0
  %v844 = vadd.f32 %v648, 0.0
  %v845 = vadd.f32 %v651, 0.0
  %v846 = vand.u32 2147483647, %v400
  %v847 = vand.u32 2147483647, %v403
  %v848 = vand.u32 2147483647, %v408
  %v849 = vand.u32 2147483647, %v411
  %v850 = vand.u32 2147483647, %v416
  %v851 = vand.u32 2147483647, %v419
  %v852 = vand.u32 2147483647, %v424
  %v853 = vand.u32 2147483647, %v427
  %v854 = vand.u32 2147483647, %v432
  %v855 = vand.u32 2147483647, %v435
  %v856 = vand.u32 2147483647, %v440
  %v857 = vand.u32 2147483647, %v443
  %v858 = vand.u32 2147483647, %v448
  %v859 = vand.u32 2147483647, %v451
  %v860 = vand.u32 2147483647, %v456
  %v861 = vand.u32 2147483647, %v459
  %v862 = vand.u32 2147483647, %v464
  %v863 = vand.u32 2147483647, %v467
  %v864 = vand.u32 2147483647, %v472
  %v865 = vand.u32 2147483647, %v475
  %v866 = vand.u32 2147483647, %v480
  %v867 = vand.u32 2147483647, %v483
  %v868 = vand.u32 2147483647, %v488
  %v869 = vand.u32 2147483647, %v491
  %v870 = vand.u32 2147483647, %v496
  %v871 = vand.u32 2147483647, %v499
  %v872 = vand.u32 2147483647, %v504
  %v873 = vand.u32 2147483647, %v507
  %v874 = vand.u32 2147483647, %v512
  %v875 = vand.u32 2147483647, %v515
  %v876 = vand.u32 2147483647, %v520
  %v877 = vand.u32 2147483647, %v523
  %v878 = vand.u32 2147483647, %v528
  %v879 = vand.u32 2147483647, %v531
  %v880 = vand.u32 2147483647, %v536
  %v881 = vand.u32 2147483647, %v539
  %v882 = vand.u32 2147483647, %v544
  %v883 = vand.u32 2147483647, %v547
  %v884 = vand.u32 2147483647, %v552
  %v885 = vand.u32 2147483647, %v555
  %v886 = vand.u32 2147483647, %v560
  %v887 = vand.u32 2147483647, %v563
  %v888 = vand.u32 2147483647, %v568
  %v889 = vand.u32 2147483647, %v571
  %v890 = vand.u32 2147483647, %v576
  %v891 = vand.u32 2147483647, %v579
  %v892 = vand.u32 2147483647, %v584
  %v893 = vand.u32 2147483647, %v587
  %v894 = vand.u32 2147483647, %v592
  %v895 = vand.u32 2147483647, %v595
  %v896 = vand.u32 2147483647, %v600
  %v897 = vand.u32 2147483647, %v603
  %v898 = vand.u32 2147483647, %v608
  %v899 = vand.u32 2147483647, %v611
  %v900 = vand.u32 2147483647, %v616
  %v901 = vand.u32 2147483647, %v619
  %v902 = vand.u32 2147483647, %v624
  %v903 = vand.u32 2147483647, %v627
  %v904 = vand.u32 2147483647, %v632
  %v905 = vand.u32 2147483647, %v635
  %v906 = vand.u32 2147483647, %v640
  %v907 = vand.u32 2147483647, %v643
  %v908 = vand.u32 2147483647, %v648
  %v909 = vand.u32 2147483647, %v651
  %v910 = vsub.f32 0.0, %v846
  %v911 = vsub.f32 0.0, %v847
  %v912 = vsub.f32 0.0, %v848
  %v913 = vsub.f32 0.0, %v849
  %v914 = vsub.f32 0.0, %v850
  %v915 = vsub.f32 0.0, %v851
  %v916 = vsub.f32 0.0, %v852
  %v917 = vsub.f32 0.0, %v853
  %v918 = vsub.f32 0.0, %v854
  %v919 = vsub.f32 0.0, %v855
  %v920 = vsub.f32 0.0, %v856
  %v921 = vsub.f32 0.0, %v857
  %v922 = vsub.f32 0.0, %v858
  %v923 = vsub.f32 0.0, %v859
  %v924 = vsub.f32 0.0, %v860
  %v925 = vsub.f32 0.0, %v861
  %v926 = vsub.f32 0.0, %v862
  %v927 = vsub.f32 0.0, %v863
  %v928 = vsub.f32 0.0, %v864
  %v929 = vsub.f32 0.0, %v865
  %v930 = vsub.f32 0.0, %v866
  %v931 = vsub.f32 0.0, %v867
  %v932 = vsub.f32 0.0, %v868
  %v933 = vsub.f32 0.0, %v869
  %v934 = vsub.f32 0.0, %v870
  %v935 = vsub.f32 0.0, %v871
  %v936 = vsub.f32 0.0, %v872
  %v937 = vsub.f32 0.0, %v873
  %v938 = vsub.f32 0.0, %v874
  %v939 = vsub.f32 0.0, %v875
  %v940 = vsub.f32 0.0, %v876
  %v941 = vsub.f32 0.0, %v877
  %v942 = vsub.f32 0.0, %v878
  %v943 = vsub.f32 0.0, %v879
  %v944 = vsub.f32 0.0, %v880
  %v945 = vsub.f32 0.0, %v881
  %v946 = vsub.f32 0.0, %v882
  %v947 = vsub.f32 0.0, %v883
  %v948 = vsub.f32 0.0, %v884
  %v949 = vsub.f32 0.0, %v885
  %v950 = vsub.f32 0.0, %v886
  %v951 = vsub.f32 0.0, %v887
  %v952 = vsub.f32 0.0, %v888
  %v953 = vsub.f32 0.0, %v889
  %v954 = vsub.f32 0.0, %v890
  %v955 = vsub.f32 0.0, %v891
  %v956 = vsub.f32 0.0, %v892
  %v957 = vsub.f32 0.0, %v893
  %v958 = vsub.f32 0.0, %v894
  %v959 = vsub.f32 0.0, %v895
  %v960 = vsub.f32 0.0, %v896
  %v961 = vsub.f32 0.0, %v897
  %v962 = vsub.f32 0.0, %v898
  %v963 = vsub.f32 0.0, %v899
  %v964 = vsub.f32 0.0, %v900
  %v965 = vsub.f32 0.0, %v901
  %v966 = vsub.f32 0.0, %v902
  %v967 = vsub.f32 0.0, %v903
  %v968 = vsub.f32 0.0, %v904
  %v969 = vsub.f32 0.0, %v905
  %v970 = vsub.f32 0.0, %v906
  %v971 = vsub.f32 0.0, %v907
  %v972 = vsub.f32 0.0, %v908
  %v973 = vsub.f32 0.0, %v909
  %v974 = vmul.f32 %v910, 1.442695
  %v975 = vpow.pop %v974
  %v976 = vmul.f32 %v911, 1.442695
  %v977 = vpow.pop %v976
  %v978 = vmul.f32 %v912, 1.442695
  %v979 = vpow.pop %v978
  %v980 = vmul.f32 %v913, 1.442695
  %v981 = vpow.pop %v980
  %v982 = vmul.f32 %v914, 1.442695
  %v983 = vpow.pop %v982
  %v984 = vmul.f32 %v915, 1.442695
  %v985 = vpow.pop %v984
  %v986 = vmul.f32 %v916, 1.442695
  %v987 = vpow.pop %v986
  %v988 = vmul.f32 %v917, 1.442695
  %v989 = vpow.pop %v988
  %v990 = vmul.f32 %v918, 1.442695
  %v991 = vpow.pop %v990
  %v992 = vmul.f32 %v919, 1.442695
  %v993 = vpow.pop %v992
  %v994 = vmul.f32 %v920, 1.442695
  %v995 = vpow.pop %v994
  %v996 = vmul.f32 %v921, 1.442695
  %v997 = vpow.pop %v996
  %v998 = vmul.f32 %v922, 1.442695
  %v999 = vpow.pop %v998
  %v1000 = vmul.f32 %v923, 1.442695
  %v1001 = vpow.pop %v1000
  %v1002 = vmul.f32 %v924, 1.442695
  %v1003 = vpow.pop %v1002
  %v1004 = vmul.f32 %v925, 1.442695
  %v1005 = vpow.pop %v1004
  %v1006 = vmul.f32 %v926, 1.442695
  %v1007 = vpow.pop %v1006
  %v1008 = vmul.f32 %v927, 1.442695
  %v1009 = vpow.pop %v1008
  %v1010 = vmul.f32 %v928, 1.442695
  %v1011 = vpow.pop %v1010
  %v1012 = vmul.f32 %v929, 1.442695
  %v1013 = vpow.pop %v1012
  %v1014 = vmul.f32 %v930, 1.442695
  %v1015 = vpow.pop %v1014
  %v1016 = vmul.f32 %v931, 1.442695
  %v1017 = vpow.pop %v1016
  %v1018 = vmul.f32 %v932, 1.442695
  %v1019 = vpow.pop %v1018
  %v1020 = vmul.f32 %v933, 1.442695
  %v1021 = vpow.pop %v1020
  %v1022 = vmul.f32 %v934, 1.442695
  %v1023 = vpow.pop %v1022
  %v1024 = vmul.f32 %v935, 1.442695
  %v1025 = vpow.pop %v1024
  %v1026 = vmul.f32 %v936, 1.442695
  %v1027 = vpow.pop %v1026
  %v1028 = vmul.f32 %v937, 1.442695
  %v1029 = vpow.pop %v1028
  %v1030 = vmul.f32 %v938, 1.442695
  %v1031 = vpow.pop %v1030
  %v1032 = vmul.f32 %v939, 1.442695
  %v1033 = vpow.pop %v1032
  %v1034 = vmul.f32 %v940, 1.442695
  %v1035 = vpow.pop %v1034
  %v1036 = vmul.f32 %v941, 1.442695
  %v1037 = vpow.pop %v1036
  %v1038 = vmul.f32 %v942, 1.442695
  %v1039 = vpow.pop %v1038
  %v1040 = vmul.f32 %v943, 1.442695
  %v1041 = vpow.pop %v1040
  %v1042 = vmul.f32 %v944, 1.442695
  %v1043 = vpow.pop %v1042
  %v1044 = vmul.f32 %v945, 1.442695
  %v1045 = vpow.pop %v1044
  %v1046 = vmul.f32 %v946, 1.442695
  %v1047 = vpow.pop %v1046
  %v1048 = vmul.f32 %v947, 1.442695
  %v1049 = vpow.pop %v1048
  %v1050 = vmul.f32 %v948, 1.442695
  %v1051 = vpow.pop %v1050
  %v1052 = vmul.f32 %v949, 1.442695
  %v1053 = vpow.pop %v1052
  %v1054 = vmul.f32 %v950, 1.442695
  %v1055 = vpow.pop %v1054
  %v1056 = vmul.f32 %v951, 1.442695
  %v1057 = vpow.pop %v1056
  %v1058 = vmul.f32 %v952, 1.442695
  %v1059 = vpow.pop %v1058
  %v1060 = vmul.f32 %v953, 1.442695
  %v1061 = vpow.pop %v1060
  %v1062 = vmul.f32 %v954, 1.442695
  %v1063 = vpow.pop %v1062
  %v1064 = vmul.f32 %v955, 1.442695
  %v1065 = vpow.pop %v1064
  %v1066 = vmul.f32 %v956, 1.442695
  %v1067 = vpow.pop %v1066
  %v1068 = vmul.f32 %v957, 1.442695
  %v1069 = vpow.pop %v1068
  %v1070 = vmul.f32 %v958, 1.442695
  %v1071 = vpow.pop %v1070
  %v1072 = vmul.f32 %v959, 1.442695
  %v1073 = vpow.pop %v1072
  %v1074 = vmul.f32 %v960, 1.442695
  %v1075 = vpow.pop %v1074
  %v1076 = vmul.f32 %v961, 1.442695
  %v1077 = vpow.pop %v1076
  %v1078 = vmul.f32 %v962, 1.442695
  %v1079 = vpow.pop %v1078
  %v1080 = vmul.f32 %v963, 1.442695
  %v1081 = vpow.pop %v1080
  %v1082 = vmul.f32 %v964, 1.442695
  %v1083 = vpow.pop %v1082
  %v1084 = vmul.f32 %v965, 1.442695
  %v1085 = vpow.pop %v1084
  %v1086 = vmul.f32 %v966, 1.442695
  %v1087 = vpow.pop %v1086
  %v1088 = vmul.f32 %v967, 1.442695
  %v1089 = vpow.pop %v1088
  %v1090 = vmul.f32 %v968, 1.442695
  %v1091 = vpow.pop %v1090
  %v1092 = vmul.f32 %v969, 1.442695
  %v1093 = vpow.pop %v1092
  %v1094 = vmul.f32 %v970, 1.442695
  %v1095 = vpow.pop %v1094
  %v1096 = vmul.f32 %v971, 1.442695
  %v1097 = vpow.pop %v1096
  %v1098 = vmul.f32 %v972, 1.442695
  %v1099 = vpow.pop %v1098
  %v1100 = vmul.f32 %v973, 1.442695
  %v1101 = vpow.pop %v1100
  %v1102 = vadd.f32 %v975, 1.0
  %v1103 = vlog2.pop %v1102
  %v1104 = vmul.f32 %v1103, 0.6931472
  %v1105 = vmul.f32 -0.5, %v975
  %v1106 = vadd.f32 %v1105, 1.0
  %v1107 = vmul.f32 %v1106, %v975
  %v1108 = vand.u32 2147483647, %v975
  %vm1109 = vcmp.lt.f32.partialorder %v1108, 0.0004427343
  %v1110 = vsel %vm1109, %v1107, %v1104
  %v1111 = vadd.f32 %v977, 1.0
  %v1112 = vlog2.pop %v1111
  %v1113 = vmul.f32 %v1112, 0.6931472
  %v1114 = vmul.f32 -0.5, %v977
  %v1115 = vadd.f32 %v1114, 1.0
  %v1116 = vmul.f32 %v1115, %v977
  %v1117 = vand.u32 2147483647, %v977
  %vm1118 = vcmp.lt.f32.partialorder %v1117, 0.0004427343
  %v1119 = vsel %vm1118, %v1116, %v1113
  %v1120 = vadd.f32 %v979, 1.0
  %v1121 = vlog2.pop %v1120
  %v1122 = vmul.f32 %v1121, 0.6931472
  %v1123 = vmul.f32 -0.5, %v979
  %v1124 = vadd.f32 %v1123, 1.0
  %v1125 = vmul.f32 %v1124, %v979
  %v1126 = vand.u32 2147483647, %v979
  %vm1127 = vcmp.lt.f32.partialorder %v1126, 0.0004427343
  %v1128 = vsel %vm1127, %v1125, %v1122
  %v1129 = vadd.f32 %v981, 1.0
  %v1130 = vlog2.pop %v1129
  %v1131 = vmul.f32 %v1130, 0.6931472
  %v1132 = vmul.f32 -0.5, %v981
  %v1133 = vadd.f32 %v1132, 1.0
  %v1134 = vmul.f32 %v1133, %v981
  %v1135 = vand.u32 2147483647, %v981
  %vm1136 = vcmp.lt.f32.partialorder %v1135, 0.0004427343
  %v1137 = vsel %vm1136, %v1134, %v1131
  %v1138 = vadd.f32 %v983, 1.0
  %v1139 = vlog2.pop %v1138
  %v1140 = vmul.f32 %v1139, 0.6931472
  %v1141 = vmul.f32 -0.5, %v983
  %v1142 = vadd.f32 %v1141, 1.0
  %v1143 = vmul.f32 %v1142, %v983
  %v1144 = vand.u32 2147483647, %v983
  %vm1145 = vcmp.lt.f32.partialorder %v1144, 0.0004427343
  %v1146 = vsel %vm1145, %v1143, %v1140
  %v1147 = vadd.f32 %v985, 1.0
  %v1148 = vlog2.pop %v1147
  %v1149 = vmul.f32 %v1148, 0.6931472
  %v1150 = vmul.f32 -0.5, %v985
  %v1151 = vadd.f32 %v1150, 1.0
  %v1152 = vmul.f32 %v1151, %v985
  %v1153 = vand.u32 2147483647, %v985
  %vm1154 = vcmp.lt.f32.partialorder %v1153, 0.0004427343
  %v1155 = vsel %vm1154, %v1152, %v1149
  %v1156 = vadd.f32 %v987, 1.0
  %v1157 = vlog2.pop %v1156
  %v1158 = vmul.f32 %v1157, 0.6931472
  %v1159 = vmul.f32 -0.5, %v987
  %v1160 = vadd.f32 %v1159, 1.0
  %v1161 = vmul.f32 %v1160, %v987
  %v1162 = vand.u32 2147483647, %v987
  %vm1163 = vcmp.lt.f32.partialorder %v1162, 0.0004427343
  %v1164 = vsel %vm1163, %v1161, %v1158
  %v1165 = vadd.f32 %v989, 1.0
  %v1166 = vlog2.pop %v1165
  %v1167 = vmul.f32 %v1166, 0.6931472
  %v1168 = vmul.f32 -0.5, %v989
  %v1169 = vadd.f32 %v1168, 1.0
  %v1170 = vmul.f32 %v1169, %v989
  %v1171 = vand.u32 2147483647, %v989
  %vm1172 = vcmp.lt.f32.partialorder %v1171, 0.0004427343
  %v1173 = vsel %vm1172, %v1170, %v1167
  %v1174 = vadd.f32 %v991, 1.0
  %v1175 = vlog2.pop %v1174
  %v1176 = vmul.f32 %v1175, 0.6931472
  %v1177 = vmul.f32 -0.5, %v991
  %v1178 = vadd.f32 %v1177, 1.0
  %v1179 = vmul.f32 %v1178, %v991
  %v1180 = vand.u32 2147483647, %v991
  %vm1181 = vcmp.lt.f32.partialorder %v1180, 0.0004427343
  %v1182 = vsel %vm1181, %v1179, %v1176
  %v1183 = vadd.f32 %v993, 1.0
  %v1184 = vlog2.pop %v1183
  %v1185 = vmul.f32 %v1184, 0.6931472
  %v1186 = vmul.f32 -0.5, %v993
  %v1187 = vadd.f32 %v1186, 1.0
  %v1188 = vmul.f32 %v1187, %v993
  %v1189 = vand.u32 2147483647, %v993
  %vm1190 = vcmp.lt.f32.partialorder %v1189, 0.0004427343
  %v1191 = vsel %vm1190, %v1188, %v1185
  %v1192 = vadd.f32 %v995, 1.0
  %v1193 = vlog2.pop %v1192
  %v1194 = vmul.f32 %v1193, 0.6931472
  %v1195 = vmul.f32 -0.5, %v995
  %v1196 = vadd.f32 %v1195, 1.0
  %v1197 = vmul.f32 %v1196, %v995
  %v1198 = vand.u32 2147483647, %v995
  %vm1199 = vcmp.lt.f32.partialorder %v1198, 0.0004427343
  %v1200 = vsel %vm1199, %v1197, %v1194
  %v1201 = vadd.f32 %v997, 1.0
  %v1202 = vlog2.pop %v1201
  %v1203 = vmul.f32 %v1202, 0.6931472
  %v1204 = vmul.f32 -0.5, %v997
  %v1205 = vadd.f32 %v1204, 1.0
  %v1206 = vmul.f32 %v1205, %v997
  %v1207 = vand.u32 2147483647, %v997
  %vm1208 = vcmp.lt.f32.partialorder %v1207, 0.0004427343
  %v1209 = vsel %vm1208, %v1206, %v1203
  %v1210 = vadd.f32 %v999, 1.0
  %v1211 = vlog2.pop %v1210
  %v1212 = vmul.f32 %v1211, 0.6931472
  %v1213 = vmul.f32 -0.5, %v999
  %v1214 = vadd.f32 %v1213, 1.0
  %v1215 = vmul.f32 %v1214, %v999
  %v1216 = vand.u32 2147483647, %v999
  %vm1217 = vcmp.lt.f32.partialorder %v1216, 0.0004427343
  %v1218 = vsel %vm1217, %v1215, %v1212
  %v1219 = vadd.f32 %v1001, 1.0
  %v1220 = vlog2.pop %v1219
  %v1221 = vmul.f32 %v1220, 0.6931472
  %v1222 = vmul.f32 -0.5, %v1001
  %v1223 = vadd.f32 %v1222, 1.0
  %v1224 = vmul.f32 %v1223, %v1001
  %v1225 = vand.u32 2147483647, %v1001
  %vm1226 = vcmp.lt.f32.partialorder %v1225, 0.0004427343
  %v1227 = vsel %vm1226, %v1224, %v1221
  %v1228 = vadd.f32 %v1003, 1.0
  %v1229 = vlog2.pop %v1228
  %v1230 = vmul.f32 %v1229, 0.6931472
  %v1231 = vmul.f32 -0.5, %v1003
  %v1232 = vadd.f32 %v1231, 1.0
  %v1233 = vmul.f32 %v1232, %v1003
  %v1234 = vand.u32 2147483647, %v1003
  %vm1235 = vcmp.lt.f32.partialorder %v1234, 0.0004427343
  %v1236 = vsel %vm1235, %v1233, %v1230
  %v1237 = vadd.f32 %v1005, 1.0
  %v1238 = vlog2.pop %v1237
  %v1239 = vmul.f32 %v1238, 0.6931472
  %v1240 = vmul.f32 -0.5, %v1005
  %v1241 = vadd.f32 %v1240, 1.0
  %v1242 = vmul.f32 %v1241, %v1005
  %v1243 = vand.u32 2147483647, %v1005
  %vm1244 = vcmp.lt.f32.partialorder %v1243, 0.0004427343
  %v1245 = vsel %vm1244, %v1242, %v1239
  %v1246 = vadd.f32 %v1007, 1.0
  %v1247 = vlog2.pop %v1246
  %v1248 = vmul.f32 %v1247, 0.6931472
  %v1249 = vmul.f32 -0.5, %v1007
  %v1250 = vadd.f32 %v1249, 1.0
  %v1251 = vmul.f32 %v1250, %v1007
  %v1252 = vand.u32 2147483647, %v1007
  %vm1253 = vcmp.lt.f32.partialorder %v1252, 0.0004427343
  %v1254 = vsel %vm1253, %v1251, %v1248
  %v1255 = vadd.f32 %v1009, 1.0
  %v1256 = vlog2.pop %v1255
  %v1257 = vmul.f32 %v1256, 0.6931472
  %v1258 = vmul.f32 -0.5, %v1009
  %v1259 = vadd.f32 %v1258, 1.0
  %v1260 = vmul.f32 %v1259, %v1009
  %v1261 = vand.u32 2147483647, %v1009
  %vm1262 = vcmp.lt.f32.partialorder %v1261, 0.0004427343
  %v1263 = vsel %vm1262, %v1260, %v1257
  %v1264 = vadd.f32 %v1011, 1.0
  %v1265 = vlog2.pop %v1264
  %v1266 = vmul.f32 %v1265, 0.6931472
  %v1267 = vmul.f32 -0.5, %v1011
  %v1268 = vadd.f32 %v1267, 1.0
  %v1269 = vmul.f32 %v1268, %v1011
  %v1270 = vand.u32 2147483647, %v1011
  %vm1271 = vcmp.lt.f32.partialorder %v1270, 0.0004427343
  %v1272 = vsel %vm1271, %v1269, %v1266
  %v1273 = vadd.f32 %v1013, 1.0
  %v1274 = vlog2.pop %v1273
  %v1275 = vmul.f32 %v1274, 0.6931472
  %v1276 = vmul.f32 -0.5, %v1013
  %v1277 = vadd.f32 %v1276, 1.0
  %v1278 = vmul.f32 %v1277, %v1013
  %v1279 = vand.u32 2147483647, %v1013
  %vm1280 = vcmp.lt.f32.partialorder %v1279, 0.0004427343
  %v1281 = vsel %vm1280, %v1278, %v1275
  %v1282 = vadd.f32 %v1015, 1.0
  %v1283 = vlog2.pop %v1282
  %v1284 = vmul.f32 %v1283, 0.6931472
  %v1285 = vmul.f32 -0.5, %v1015
  %v1286 = vadd.f32 %v1285, 1.0
  %v1287 = vmul.f32 %v1286, %v1015
  %v1288 = vand.u32 2147483647, %v1015
  %vm1289 = vcmp.lt.f32.partialorder %v1288, 0.0004427343
  %v1290 = vsel %vm1289, %v1287, %v1284
  %v1291 = vadd.f32 %v1017, 1.0
  %v1292 = vlog2.pop %v1291
  %v1293 = vmul.f32 %v1292, 0.6931472
  %v1294 = vmul.f32 -0.5, %v1017
  %v1295 = vadd.f32 %v1294, 1.0
  %v1296 = vmul.f32 %v1295, %v1017
  %v1297 = vand.u32 2147483647, %v1017
  %vm1298 = vcmp.lt.f32.partialorder %v1297, 0.0004427343
  %v1299 = vsel %vm1298, %v1296, %v1293
  %v1300 = vadd.f32 %v1019, 1.0
  %v1301 = vlog2.pop %v1300
  %v1302 = vmul.f32 %v1301, 0.6931472
  %v1303 = vmul.f32 -0.5, %v1019
  %v1304 = vadd.f32 %v1303, 1.0
  %v1305 = vmul.f32 %v1304, %v1019
  %v1306 = vand.u32 2147483647, %v1019
  %vm1307 = vcmp.lt.f32.partialorder %v1306, 0.0004427343
  %v1308 = vsel %vm1307, %v1305, %v1302
  %v1309 = vadd.f32 %v1021, 1.0
  %v1310 = vlog2.pop %v1309
  %v1311 = vmul.f32 %v1310, 0.6931472
  %v1312 = vmul.f32 -0.5, %v1021
  %v1313 = vadd.f32 %v1312, 1.0
  %v1314 = vmul.f32 %v1313, %v1021
  %v1315 = vand.u32 2147483647, %v1021
  %vm1316 = vcmp.lt.f32.partialorder %v1315, 0.0004427343
  %v1317 = vsel %vm1316, %v1314, %v1311
  %v1318 = vadd.f32 %v1023, 1.0
  %v1319 = vlog2.pop %v1318
  %v1320 = vmul.f32 %v1319, 0.6931472
  %v1321 = vmul.f32 -0.5, %v1023
  %v1322 = vadd.f32 %v1321, 1.0
  %v1323 = vmul.f32 %v1322, %v1023
  %v1324 = vand.u32 2147483647, %v1023
  %vm1325 = vcmp.lt.f32.partialorder %v1324, 0.0004427343
  %v1326 = vsel %vm1325, %v1323, %v1320
  %v1327 = vadd.f32 %v1025, 1.0
  %v1328 = vlog2.pop %v1327
  %v1329 = vmul.f32 %v1328, 0.6931472
  %v1330 = vmul.f32 -0.5, %v1025
  %v1331 = vadd.f32 %v1330, 1.0
  %v1332 = vmul.f32 %v1331, %v1025
  %v1333 = vand.u32 2147483647, %v1025
  %vm1334 = vcmp.lt.f32.partialorder %v1333, 0.0004427343
  %v1335 = vsel %vm1334, %v1332, %v1329
  %v1336 = vadd.f32 %v1027, 1.0
  %v1337 = vlog2.pop %v1336
  %v1338 = vmul.f32 %v1337, 0.6931472
  %v1339 = vmul.f32 -0.5, %v1027
  %v1340 = vadd.f32 %v1339, 1.0
  %v1341 = vmul.f32 %v1340, %v1027
  %v1342 = vand.u32 2147483647, %v1027
  %vm1343 = vcmp.lt.f32.partialorder %v1342, 0.0004427343
  %v1344 = vsel %vm1343, %v1341, %v1338
  %v1345 = vadd.f32 %v1029, 1.0
  %v1346 = vlog2.pop %v1345
  %v1347 = vmul.f32 %v1346, 0.6931472
  %v1348 = vmul.f32 -0.5, %v1029
  %v1349 = vadd.f32 %v1348, 1.0
  %v1350 = vmul.f32 %v1349, %v1029
  %v1351 = vand.u32 2147483647, %v1029
  %vm1352 = vcmp.lt.f32.partialorder %v1351, 0.0004427343
  %v1353 = vsel %vm1352, %v1350, %v1347
  %v1354 = vadd.f32 %v1031, 1.0
  %v1355 = vlog2.pop %v1354
  %v1356 = vmul.f32 %v1355, 0.6931472
  %v1357 = vmul.f32 -0.5, %v1031
  %v1358 = vadd.f32 %v1357, 1.0
  %v1359 = vmul.f32 %v1358, %v1031
  %v1360 = vand.u32 2147483647, %v1031
  %vm1361 = vcmp.lt.f32.partialorder %v1360, 0.0004427343
  %v1362 = vsel %vm1361, %v1359, %v1356
  %v1363 = vadd.f32 %v1033, 1.0
  %v1364 = vlog2.pop %v1363
  %v1365 = vmul.f32 %v1364, 0.6931472
  %v1366 = vmul.f32 -0.5, %v1033
  %v1367 = vadd.f32 %v1366, 1.0
  %v1368 = vmul.f32 %v1367, %v1033
  %v1369 = vand.u32 2147483647, %v1033
  %vm1370 = vcmp.lt.f32.partialorder %v1369, 0.0004427343
  %v1371 = vsel %vm1370, %v1368, %v1365
  %v1372 = vadd.f32 %v1035, 1.0
  %v1373 = vlog2.pop %v1372
  %v1374 = vmul.f32 %v1373, 0.6931472
  %v1375 = vmul.f32 -0.5, %v1035
  %v1376 = vadd.f32 %v1375, 1.0
  %v1377 = vmul.f32 %v1376, %v1035
  %v1378 = vand.u32 2147483647, %v1035
  %vm1379 = vcmp.lt.f32.partialorder %v1378, 0.0004427343
  %v1380 = vsel %vm1379, %v1377, %v1374
  %v1381 = vadd.f32 %v1037, 1.0
  %v1382 = vlog2.pop %v1381
  %v1383 = vmul.f32 %v1382, 0.6931472
  %v1384 = vmul.f32 -0.5, %v1037
  %v1385 = vadd.f32 %v1384, 1.0
  %v1386 = vmul.f32 %v1385, %v1037
  %v1387 = vand.u32 2147483647, %v1037
  %vm1388 = vcmp.lt.f32.partialorder %v1387, 0.0004427343
  %v1389 = vsel %vm1388, %v1386, %v1383
  %v1390 = vadd.f32 %v1039, 1.0
  %v1391 = vlog2.pop %v1390
  %v1392 = vmul.f32 %v1391, 0.6931472
  %v1393 = vmul.f32 -0.5, %v1039
  %v1394 = vadd.f32 %v1393, 1.0
  %v1395 = vmul.f32 %v1394, %v1039
  %v1396 = vand.u32 2147483647, %v1039
  %vm1397 = vcmp.lt.f32.partialorder %v1396, 0.0004427343
  %v1398 = vsel %vm1397, %v1395, %v1392
  %v1399 = vadd.f32 %v1041, 1.0
  %v1400 = vlog2.pop %v1399
  %v1401 = vmul.f32 %v1400, 0.6931472
  %v1402 = vmul.f32 -0.5, %v1041
  %v1403 = vadd.f32 %v1402, 1.0
  %v1404 = vmul.f32 %v1403, %v1041
  %v1405 = vand.u32 2147483647, %v1041
  %vm1406 = vcmp.lt.f32.partialorder %v1405, 0.0004427343
  %v1407 = vsel %vm1406, %v1404, %v1401
  %v1408 = vadd.f32 %v1043, 1.0
  %v1409 = vlog2.pop %v1408
  %v1410 = vmul.f32 %v1409, 0.6931472
  %v1411 = vmul.f32 -0.5, %v1043
  %v1412 = vadd.f32 %v1411, 1.0
  %v1413 = vmul.f32 %v1412, %v1043
  %v1414 = vand.u32 2147483647, %v1043
  %vm1415 = vcmp.lt.f32.partialorder %v1414, 0.0004427343
  %v1416 = vsel %vm1415, %v1413, %v1410
  %v1417 = vadd.f32 %v1045, 1.0
  %v1418 = vlog2.pop %v1417
  %v1419 = vmul.f32 %v1418, 0.6931472
  %v1420 = vmul.f32 -0.5, %v1045
  %v1421 = vadd.f32 %v1420, 1.0
  %v1422 = vmul.f32 %v1421, %v1045
  %v1423 = vand.u32 2147483647, %v1045
  %vm1424 = vcmp.lt.f32.partialorder %v1423, 0.0004427343
  %v1425 = vsel %vm1424, %v1422, %v1419
  %v1426 = vadd.f32 %v1047, 1.0
  %v1427 = vlog2.pop %v1426
  %v1428 = vmul.f32 %v1427, 0.6931472
  %v1429 = vmul.f32 -0.5, %v1047
  %v1430 = vadd.f32 %v1429, 1.0
  %v1431 = vmul.f32 %v1430, %v1047
  %v1432 = vand.u32 2147483647, %v1047
  %vm1433 = vcmp.lt.f32.partialorder %v1432, 0.0004427343
  %v1434 = vsel %vm1433, %v1431, %v1428
  %v1435 = vadd.f32 %v1049, 1.0
  %v1436 = vlog2.pop %v1435
  %v1437 = vmul.f32 %v1436, 0.6931472
  %v1438 = vmul.f32 -0.5, %v1049
  %v1439 = vadd.f32 %v1438, 1.0
  %v1440 = vmul.f32 %v1439, %v1049
  %v1441 = vand.u32 2147483647, %v1049
  %vm1442 = vcmp.lt.f32.partialorder %v1441, 0.0004427343
  %v1443 = vsel %vm1442, %v1440, %v1437
  %v1444 = vadd.f32 %v1051, 1.0
  %v1445 = vlog2.pop %v1444
  %v1446 = vmul.f32 %v1445, 0.6931472
  %v1447 = vmul.f32 -0.5, %v1051
  %v1448 = vadd.f32 %v1447, 1.0
  %v1449 = vmul.f32 %v1448, %v1051
  %v1450 = vand.u32 2147483647, %v1051
  %vm1451 = vcmp.lt.f32.partialorder %v1450, 0.0004427343
  %v1452 = vsel %vm1451, %v1449, %v1446
  %v1453 = vadd.f32 %v1053, 1.0
  %v1454 = vlog2.pop %v1453
  %v1455 = vmul.f32 %v1454, 0.6931472
  %v1456 = vmul.f32 -0.5, %v1053
  %v1457 = vadd.f32 %v1456, 1.0
  %v1458 = vmul.f32 %v1457, %v1053
  %v1459 = vand.u32 2147483647, %v1053
  %vm1460 = vcmp.lt.f32.partialorder %v1459, 0.0004427343
  %v1461 = vsel %vm1460, %v1458, %v1455
  %v1462 = vadd.f32 %v1055, 1.0
  %v1463 = vlog2.pop %v1462
  %v1464 = vmul.f32 %v1463, 0.6931472
  %v1465 = vmul.f32 -0.5, %v1055
  %v1466 = vadd.f32 %v1465, 1.0
  %v1467 = vmul.f32 %v1466, %v1055
  %v1468 = vand.u32 2147483647, %v1055
  %vm1469 = vcmp.lt.f32.partialorder %v1468, 0.0004427343
  %v1470 = vsel %vm1469, %v1467, %v1464
  %v1471 = vadd.f32 %v1057, 1.0
  %v1472 = vlog2.pop %v1471
  %v1473 = vmul.f32 %v1472, 0.6931472
  %v1474 = vmul.f32 -0.5, %v1057
  %v1475 = vadd.f32 %v1474, 1.0
  %v1476 = vmul.f32 %v1475, %v1057
  %v1477 = vand.u32 2147483647, %v1057
  %vm1478 = vcmp.lt.f32.partialorder %v1477, 0.0004427343
  %v1479 = vsel %vm1478, %v1476, %v1473
  %v1480 = vadd.f32 %v1059, 1.0
  %v1481 = vlog2.pop %v1480
  %v1482 = vmul.f32 %v1481, 0.6931472
  %v1483 = vmul.f32 -0.5, %v1059
  %v1484 = vadd.f32 %v1483, 1.0
  %v1485 = vmul.f32 %v1484, %v1059
  %v1486 = vand.u32 2147483647, %v1059
  %vm1487 = vcmp.lt.f32.partialorder %v1486, 0.0004427343
  %v1488 = vsel %vm1487, %v1485, %v1482
  %v1489 = vadd.f32 %v1061, 1.0
  %v1490 = vlog2.pop %v1489
  %v1491 = vmul.f32 %v1490, 0.6931472
  %v1492 = vmul.f32 -0.5, %v1061
  %v1493 = vadd.f32 %v1492, 1.0
  %v1494 = vmul.f32 %v1493, %v1061
  %v1495 = vand.u32 2147483647, %v1061
  %vm1496 = vcmp.lt.f32.partialorder %v1495, 0.0004427343
  %v1497 = vsel %vm1496, %v1494, %v1491
  %v1498 = vadd.f32 %v1063, 1.0
  %v1499 = vlog2.pop %v1498
  %v1500 = vmul.f32 %v1499, 0.6931472
  %v1501 = vmul.f32 -0.5, %v1063
  %v1502 = vadd.f32 %v1501, 1.0
  %v1503 = vmul.f32 %v1502, %v1063
  %v1504 = vand.u32 2147483647, %v1063
  %vm1505 = vcmp.lt.f32.partialorder %v1504, 0.0004427343
  %v1506 = vsel %vm1505, %v1503, %v1500
  %v1507 = vadd.f32 %v1065, 1.0
  %v1508 = vlog2.pop %v1507
  %v1509 = vmul.f32 %v1508, 0.6931472
  %v1510 = vmul.f32 -0.5, %v1065
  %v1511 = vadd.f32 %v1510, 1.0
  %v1512 = vmul.f32 %v1511, %v1065
  %v1513 = vand.u32 2147483647, %v1065
  %vm1514 = vcmp.lt.f32.partialorder %v1513, 0.0004427343
  %v1515 = vsel %vm1514, %v1512, %v1509
  %v1516 = vadd.f32 %v1067, 1.0
  %v1517 = vlog2.pop %v1516
  %v1518 = vmul.f32 %v1517, 0.6931472
  %v1519 = vmul.f32 -0.5, %v1067
  %v1520 = vadd.f32 %v1519, 1.0
  %v1521 = vmul.f32 %v1520, %v1067
  %v1522 = vand.u32 2147483647, %v1067
  %vm1523 = vcmp.lt.f32.partialorder %v1522, 0.0004427343
  %v1524 = vsel %vm1523, %v1521, %v1518
  %v1525 = vadd.f32 %v1069, 1.0
  %v1526 = vlog2.pop %v1525
  %v1527 = vmul.f32 %v1526, 0.6931472
  %v1528 = vmul.f32 -0.5, %v1069
  %v1529 = vadd.f32 %v1528, 1.0
  %v1530 = vmul.f32 %v1529, %v1069
  %v1531 = vand.u32 2147483647, %v1069
  %vm1532 = vcmp.lt.f32.partialorder %v1531, 0.0004427343
  %v1533 = vsel %vm1532, %v1530, %v1527
  %v1534 = vadd.f32 %v1071, 1.0
  %v1535 = vlog2.pop %v1534
  %v1536 = vmul.f32 %v1535, 0.6931472
  %v1537 = vmul.f32 -0.5, %v1071
  %v1538 = vadd.f32 %v1537, 1.0
  %v1539 = vmul.f32 %v1538, %v1071
  %v1540 = vand.u32 2147483647, %v1071
  %vm1541 = vcmp.lt.f32.partialorder %v1540, 0.0004427343
  %v1542 = vsel %vm1541, %v1539, %v1536
  %v1543 = vadd.f32 %v1073, 1.0
  %v1544 = vlog2.pop %v1543
  %v1545 = vmul.f32 %v1544, 0.6931472
  %v1546 = vmul.f32 -0.5, %v1073
  %v1547 = vadd.f32 %v1546, 1.0
  %v1548 = vmul.f32 %v1547, %v1073
  %v1549 = vand.u32 2147483647, %v1073
  %vm1550 = vcmp.lt.f32.partialorder %v1549, 0.0004427343
  %v1551 = vsel %vm1550, %v1548, %v1545
  %v1552 = vadd.f32 %v1075, 1.0
  %v1553 = vlog2.pop %v1552
  %v1554 = vmul.f32 %v1553, 0.6931472
  %v1555 = vmul.f32 -0.5, %v1075
  %v1556 = vadd.f32 %v1555, 1.0
  %v1557 = vmul.f32 %v1556, %v1075
  %v1558 = vand.u32 2147483647, %v1075
  %vm1559 = vcmp.lt.f32.partialorder %v1558, 0.0004427343
  %v1560 = vsel %vm1559, %v1557, %v1554
  %v1561 = vadd.f32 %v1077, 1.0
  %v1562 = vlog2.pop %v1561
  %v1563 = vmul.f32 %v1562, 0.6931472
  %v1564 = vmul.f32 -0.5, %v1077
  %v1565 = vadd.f32 %v1564, 1.0
  %v1566 = vmul.f32 %v1565, %v1077
  %v1567 = vand.u32 2147483647, %v1077
  %vm1568 = vcmp.lt.f32.partialorder %v1567, 0.0004427343
  %v1569 = vsel %vm1568, %v1566, %v1563
  %v1570 = vadd.f32 %v1079, 1.0
  %v1571 = vlog2.pop %v1570
  %v1572 = vmul.f32 %v1571, 0.6931472
  %v1573 = vmul.f32 -0.5, %v1079
  %v1574 = vadd.f32 %v1573, 1.0
  %v1575 = vmul.f32 %v1574, %v1079
  %v1576 = vand.u32 2147483647, %v1079
  %vm1577 = vcmp.lt.f32.partialorder %v1576, 0.0004427343
  %v1578 = vsel %vm1577, %v1575, %v1572
  %v1579 = vadd.f32 %v1081, 1.0
  %v1580 = vlog2.pop %v1579
  %v1581 = vmul.f32 %v1580, 0.6931472
  %v1582 = vmul.f32 -0.5, %v1081
  %v1583 = vadd.f32 %v1582, 1.0
  %v1584 = vmul.f32 %v1583, %v1081
  %v1585 = vand.u32 2147483647, %v1081
  %vm1586 = vcmp.lt.f32.partialorder %v1585, 0.0004427343
  %v1587 = vsel %vm1586, %v1584, %v1581
  %v1588 = vadd.f32 %v1083, 1.0
  %v1589 = vlog2.pop %v1588
  %v1590 = vmul.f32 %v1589, 0.6931472
  %v1591 = vmul.f32 -0.5, %v1083
  %v1592 = vadd.f32 %v1591, 1.0
  %v1593 = vmul.f32 %v1592, %v1083
  %v1594 = vand.u32 2147483647, %v1083
  %vm1595 = vcmp.lt.f32.partialorder %v1594, 0.0004427343
  %v1596 = vsel %vm1595, %v1593, %v1590
  %v1597 = vadd.f32 %v1085, 1.0
  %v1598 = vlog2.pop %v1597
  %v1599 = vmul.f32 %v1598, 0.6931472
  %v1600 = vmul.f32 -0.5, %v1085
  %v1601 = vadd.f32 %v1600, 1.0
  %v1602 = vmul.f32 %v1601, %v1085
  %v1603 = vand.u32 2147483647, %v1085
  %vm1604 = vcmp.lt.f32.partialorder %v1603, 0.0004427343
  %v1605 = vsel %vm1604, %v1602, %v1599
  %v1606 = vadd.f32 %v1087, 1.0
  %v1607 = vlog2.pop %v1606
  %v1608 = vmul.f32 %v1607, 0.6931472
  %v1609 = vmul.f32 -0.5, %v1087
  %v1610 = vadd.f32 %v1609, 1.0
  %v1611 = vmul.f32 %v1610, %v1087
  %v1612 = vand.u32 2147483647, %v1087
  %vm1613 = vcmp.lt.f32.partialorder %v1612, 0.0004427343
  %v1614 = vsel %vm1613, %v1611, %v1608
  %v1615 = vadd.f32 %v1089, 1.0
  %v1616 = vlog2.pop %v1615
  %v1617 = vmul.f32 %v1616, 0.6931472
  %v1618 = vmul.f32 -0.5, %v1089
  %v1619 = vadd.f32 %v1618, 1.0
  %v1620 = vmul.f32 %v1619, %v1089
  %v1621 = vand.u32 2147483647, %v1089
  %vm1622 = vcmp.lt.f32.partialorder %v1621, 0.0004427343
  %v1623 = vsel %vm1622, %v1620, %v1617
  %v1624 = vadd.f32 %v1091, 1.0
  %v1625 = vlog2.pop %v1624
  %v1626 = vmul.f32 %v1625, 0.6931472
  %v1627 = vmul.f32 -0.5, %v1091
  %v1628 = vadd.f32 %v1627, 1.0
  %v1629 = vmul.f32 %v1628, %v1091
  %v1630 = vand.u32 2147483647, %v1091
  %vm1631 = vcmp.lt.f32.partialorder %v1630, 0.0004427343
  %v1632 = vsel %vm1631, %v1629, %v1626
  %v1633 = vadd.f32 %v1093, 1.0
  %v1634 = vlog2.pop %v1633
  %v1635 = vmul.f32 %v1634, 0.6931472
  %v1636 = vmul.f32 -0.5, %v1093
  %v1637 = vadd.f32 %v1636, 1.0
  %v1638 = vmul.f32 %v1637, %v1093
  %v1639 = vand.u32 2147483647, %v1093
  %vm1640 = vcmp.lt.f32.partialorder %v1639, 0.0004427343
  %v1641 = vsel %vm1640, %v1638, %v1635
  %v1642 = vadd.f32 %v1095, 1.0
  %v1643 = vlog2.pop %v1642
  %v1644 = vmul.f32 %v1643, 0.6931472
  %v1645 = vmul.f32 -0.5, %v1095
  %v1646 = vadd.f32 %v1645, 1.0
  %v1647 = vmul.f32 %v1646, %v1095
  %v1648 = vand.u32 2147483647, %v1095
  %vm1649 = vcmp.lt.f32.partialorder %v1648, 0.0004427343
  %v1650 = vsel %vm1649, %v1647, %v1644
  %v1651 = vadd.f32 %v1097, 1.0
  %v1652 = vlog2.pop %v1651
  %v1653 = vmul.f32 %v1652, 0.6931472
  %v1654 = vmul.f32 -0.5, %v1097
  %v1655 = vadd.f32 %v1654, 1.0
  %v1656 = vmul.f32 %v1655, %v1097
  %v1657 = vand.u32 2147483647, %v1097
  %vm1658 = vcmp.lt.f32.partialorder %v1657, 0.0004427343
  %v1659 = vsel %vm1658, %v1656, %v1653
  %v1660 = vadd.f32 %v1099, 1.0
  %v1661 = vlog2.pop %v1660
  %v1662 = vmul.f32 %v1661, 0.6931472
  %v1663 = vmul.f32 -0.5, %v1099
  %v1664 = vadd.f32 %v1663, 1.0
  %v1665 = vmul.f32 %v1664, %v1099
  %v1666 = vand.u32 2147483647, %v1099
  %vm1667 = vcmp.lt.f32.partialorder %v1666, 0.0004427343
  %v1668 = vsel %vm1667, %v1665, %v1662
  %v1669 = vadd.f32 %v1101, 1.0
  %v1670 = vlog2.pop %v1669
  %v1671 = vmul.f32 %v1670, 0.6931472
  %v1672 = vmul.f32 -0.5, %v1101
  %v1673 = vadd.f32 %v1672, 1.0
  %v1674 = vmul.f32 %v1673, %v1101
  %v1675 = vand.u32 2147483647, %v1101
  %vm1676 = vcmp.lt.f32.partialorder %v1675, 0.0004427343
  %v1677 = vsel %vm1676, %v1674, %v1671
  %v1678 = vadd.f32 %v654, %v1110
  %v1679 = vadd.f32 %v655, %v1119
  %v1680 = vadd.f32 %v656, %v1128
  %v1681 = vadd.f32 %v657, %v1137
  %v1682 = vadd.f32 %v658, %v1146
  %v1683 = vadd.f32 %v659, %v1155
  %v1684 = vadd.f32 %v660, %v1164
  %v1685 = vadd.f32 %v661, %v1173
  %v1686 = vadd.f32 %v662, %v1182
  %v1687 = vadd.f32 %v663, %v1191
  %v1688 = vadd.f32 %v664, %v1200
  %v1689 = vadd.f32 %v665, %v1209
  %v1690 = vadd.f32 %v666, %v1218
  %v1691 = vadd.f32 %v667, %v1227
  %v1692 = vadd.f32 %v668, %v1236
  %v1693 = vadd.f32 %v669, %v1245
  %v1694 = vadd.f32 %v670, %v1254
  %v1695 = vadd.f32 %v671, %v1263
  %v1696 = vadd.f32 %v672, %v1272
  %v1697 = vadd.f32 %v673, %v1281
  %v1698 = vadd.f32 %v674, %v1290
  %v1699 = vadd.f32 %v675, %v1299
  %v1700 = vadd.f32 %v676, %v1308
  %v1701 = vadd.f32 %v677, %v1317
  %v1702 = vadd.f32 %v678, %v1326
  %v1703 = vadd.f32 %v679, %v1335
  %v1704 = vadd.f32 %v680, %v1344
  %v1705 = vadd.f32 %v681, %v1353
  %v1706 = vadd.f32 %v682, %v1362
  %v1707 = vadd.f32 %v683, %v1371
  %v1708 = vadd.f32 %v684, %v1380
  %v1709 = vadd.f32 %v685, %v1389
  %v1710 = vadd.f32 %v686, %v1398
  %v1711 = vadd.f32 %v687, %v1407
  %v1712 = vadd.f32 %v688, %v1416
  %v1713 = vadd.f32 %v689, %v1425
  %v1714 = vadd.f32 %v690, %v1434
  %v1715 = vadd.f32 %v691, %v1443
  %v1716 = vadd.f32 %v692, %v1452
  %v1717 = vadd.f32 %v693, %v1461
  %v1718 = vadd.f32 %v694, %v1470
  %v1719 = vadd.f32 %v695, %v1479
  %v1720 = vadd.f32 %v696, %v1488
  %v1721 = vadd.f32 %v697, %v1497
  %v1722 = vadd.f32 %v698, %v1506
  %v1723 = vadd.f32 %v699, %v1515
  %v1724 = vadd.f32 %v700, %v1524
  %v1725 = vadd.f32 %v701, %v1533
  %v1726 = vadd.f32 %v702, %v1542
  %v1727 = vadd.f32 %v703, %v1551
  %v1728 = vadd.f32 %v704, %v1560
  %v1729 = vadd.f32 %v705, %v1569
  %v1730 = vadd.f32 %v706, %v1578
  %v1731 = vadd.f32 %v707, %v1587
  %v1732 = vadd.f32 %v708, %v1596
  %v1733 = vadd.f32 %v709, %v1605
  %v1734 = vadd.f32 %v710, %v1614
  %v1735 = vadd.f32 %v711, %v1623
  %v1736 = vadd.f32 %v712, %v1632
  %v1737 = vadd.f32 %v713, %v1641
  %v1738 = vadd.f32 %v714, %v1650
  %v1739 = vadd.f32 %v715, %v1659
  %v1740 = vadd.f32 %v716, %v1668
  %v1741 = vadd.f32 %v717, %v1677
  %v1742 = vsel %vm718, %v782, %v1678
  %v1743 = vsel %vm719, %v783, %v1679
  %v1744 = vsel %vm720, %v784, %v1680
  %v1745 = vsel %vm721, %v785, %v1681
  %v1746 = vsel %vm722, %v786, %v1682
  %v1747 = vsel %vm723, %v787, %v1683
  %v1748 = vsel %vm724, %v788, %v1684
  %v1749 = vsel %vm725, %v789, %v1685
  %v1750 = vsel %vm726, %v790, %v1686
  %v1751 = vsel %vm727, %v791, %v1687
  %v1752 = vsel %vm728, %v792, %v1688
  %v1753 = vsel %vm729, %v793, %v1689
  %v1754 = vsel %vm730, %v794, %v1690
  %v1755 = vsel %vm731, %v795, %v1691
  %v1756 = vsel %vm732, %v796, %v1692
  %v1757 = vsel %vm733, %v797, %v1693
  %v1758 = vsel %vm734, %v798, %v1694
  %v1759 = vsel %vm735, %v799, %v1695
  %v1760 = vsel %vm736, %v800, %v1696
  %v1761 = vsel %vm737, %v801, %v1697
  %v1762 = vsel %vm738, %v802, %v1698
  %v1763 = vsel %vm739, %v803, %v1699
  %v1764 = vsel %vm740, %v804, %v1700
  %v1765 = vsel %vm741, %v805, %v1701
  %v1766 = vsel %vm742, %v806, %v1702
  %v1767 = vsel %vm743, %v807, %v1703
  %v1768 = vsel %vm744, %v808, %v1704
  %v1769 = vsel %vm745, %v809, %v1705
  %v1770 = vsel %vm746, %v810, %v1706
  %v1771 = vsel %vm747, %v811, %v1707
  %v1772 = vsel %vm748, %v812, %v1708
  %v1773 = vsel %vm749, %v813, %v1709
  %v1774 = vsel %vm750, %v814, %v1710
  %v1775 = vsel %vm751, %v815, %v1711
  %v1776 = vsel %vm752, %v816, %v1712
  %v1777 = vsel %vm753, %v817, %v1713
  %v1778 = vsel %vm754, %v818, %v1714
  %v1779 = vsel %vm755, %v819, %v1715
  %v1780 = vsel %vm756, %v820, %v1716
  %v1781 = vsel %vm757, %v821, %v1717
  %v1782 = vsel %vm758, %v822, %v1718
  %v1783 = vsel %vm759, %v823, %v1719
  %v1784 = vsel %vm760, %v824, %v1720
  %v1785 = vsel %vm761, %v825, %v1721
  %v1786 = vsel %vm762, %v826, %v1722
  %v1787 = vsel %vm763, %v827, %v1723
  %v1788 = vsel %vm764, %v828, %v1724
  %v1789 = vsel %vm765, %v829, %v1725
  %v1790 = vsel %vm766, %v830, %v1726
  %v1791 = vsel %vm767, %v831, %v1727
  %v1792 = vsel %vm768, %v832, %v1728
  %v1793 = vsel %vm769, %v833, %v1729
  %v1794 = vsel %vm770, %v834, %v1730
  %v1795 = vsel %vm771, %v835, %v1731
  %v1796 = vsel %vm772, %v836, %v1732
  %v1797 = vsel %vm773, %v837, %v1733
  %v1798 = vsel %vm774, %v838, %v1734
  %v1799 = vsel %vm775, %v839, %v1735
  %v1800 = vsel %vm776, %v840, %v1736
  %v1801 = vsel %vm777, %v841, %v1737
  %v1802 = vsel %vm778, %v842, %v1738
  %v1803 = vsel %vm779, %v843, %v1739
  %v1804 = vsel %vm780, %v844, %v1740
  %v1805 = vsel %vm781, %v845, %v1741
  %v1806 = vld [vmem:[%s3] sm:$0xff]
  %v1807 = vld [vmem:[%s3 + $0x8] sm:$0xff]
  %v1808 = vld [vmem:[%s3 + $0x10] sm:$0xff]
  %v1809 = vld [vmem:[%s3 + $0x18] sm:$0xff]
  %v1810 = vld [vmem:[%s3 + $0x20] sm:$0xff]
  %v1811 = vld [vmem:[%s3 + $0x28] sm:$0xff]
  %v1812 = vld [vmem:[%s3 + $0x30] sm:$0xff]
  %v1813 = vld [vmem:[%s3 + $0x38] sm:$0xff]
  %v1814 = vld [vmem:[%s4] sm:$0x1]
  %v1816 = vlaneseq
  %v1817 = vshrl.u32 %v1816, 7
  %v1818 = vsub.s32 0, %v1817
  %v1819 = vrot.slane %v1814, %v1818
  %vm1821 = vcmask 523264
  %v1823 = vsel %vm1821, %v1742, 0
  %v1826 = vsel %vm1821, %v1743, 0
  %v1829 = vsel %vm1821, %v1744, 0
  %v1832 = vsel %vm1821, %v1745, 0
  %v1835 = vsel %vm1821, %v1746, 0
  %v1838 = vsel %vm1821, %v1747, 0
  %v1841 = vsel %vm1821, %v1748, 0
  %v1844 = vsel %vm1821, %v1749, 0
  %v1847 = vsel %vm1821, %v1750, 0
  %v1850 = vsel %vm1821, %v1751, 0
  %v1853 = vsel %vm1821, %v1752, 0
  %v1856 = vsel %vm1821, %v1753, 0
  %v1859 = vsel %vm1821, %v1754, 0
  %v1862 = vsel %vm1821, %v1755, 0
  %v1865 = vsel %vm1821, %v1756, 0
  %v1868 = vsel %vm1821, %v1757, 0
  %v1871 = vsel %vm1821, %v1758, 0
  %v1874 = vsel %vm1821, %v1759, 0
  %v1877 = vsel %vm1821, %v1760, 0
  %v1880 = vsel %vm1821, %v1761, 0
  %v1883 = vsel %vm1821, %v1762, 0
  %v1886 = vsel %vm1821, %v1763, 0
  %v1889 = vsel %vm1821, %v1764, 0
  %v1892 = vsel %vm1821, %v1765, 0
  %v1895 = vsel %vm1821, %v1766, 0
  %v1898 = vsel %vm1821, %v1767, 0
  %v1901 = vsel %vm1821, %v1768, 0
  %v1904 = vsel %vm1821, %v1769, 0
  %v1907 = vsel %vm1821, %v1770, 0
  %v1910 = vsel %vm1821, %v1771, 0
  %v1913 = vsel %vm1821, %v1772, 0
  %v1916 = vsel %vm1821, %v1773, 0
  %v1919 = vsel %vm1821, %v1774, 0
  %v1922 = vsel %vm1821, %v1775, 0
  %v1925 = vsel %vm1821, %v1776, 0
  %v1928 = vsel %vm1821, %v1777, 0
  %v1931 = vsel %vm1821, %v1778, 0
  %v1934 = vsel %vm1821, %v1779, 0
  %v1937 = vsel %vm1821, %v1780, 0
  %v1940 = vsel %vm1821, %v1781, 0
  %v1943 = vsel %vm1821, %v1782, 0
  %v1946 = vsel %vm1821, %v1783, 0
  %v1949 = vsel %vm1821, %v1784, 0
  %v1952 = vsel %vm1821, %v1785, 0
  %v1955 = vsel %vm1821, %v1786, 0
  %v1958 = vsel %vm1821, %v1787, 0
  %v1961 = vsel %vm1821, %v1788, 0
  %v1964 = vsel %vm1821, %v1789, 0
  %v1967 = vsel %vm1821, %v1790, 0
  %v1970 = vsel %vm1821, %v1791, 0
  %v1973 = vsel %vm1821, %v1792, 0
  %v1976 = vsel %vm1821, %v1793, 0
  %v1979 = vsel %vm1821, %v1794, 0
  %v1982 = vsel %vm1821, %v1795, 0
  %v1985 = vsel %vm1821, %v1796, 0
  %v1988 = vsel %vm1821, %v1797, 0
  %v1991 = vsel %vm1821, %v1798, 0
  %v1994 = vsel %vm1821, %v1799, 0
  %v1997 = vsel %vm1821, %v1800, 0
  %v2000 = vsel %vm1821, %v1801, 0
  %v2003 = vsel %vm1821, %v1802, 0
  %v2006 = vsel %vm1821, %v1803, 0
  %v2009 = vsel %vm1821, %v1804, 0
  %v2012 = vsel %vm1821, %v1805, 0
  %2014 = vmatprep.subr.mxu0 0.0
  %2015 = vmatpush1.msra.mxu0 %v1806
  %2016 = vmatprep.subr.mxu0 0.0
  %2017 = vmatpush1.msra.mxu0 %v1807
  %2018 = vmatprep.subr.mxu0 0.0
  %2019 = vmatpush1.msra.mxu0 %v1808
  %2020 = vmatprep.subr.mxu0 0.0
  %2021 = vmatpush1.msra.mxu0 %v1809
  %2022 = vmatprep.subr.mxu0 0.0
  %2023 = vmatpush1.msra.mxu0 %v1810
  %2024 = vmatprep.subr.mxu0 0.0
  %2025 = vmatpush1.msra.mxu0 %v1811
  %2026 = vmatprep.subr.mxu0 0.0
  %2027 = vmatpush1.msra.mxu0 %v1812
  %2028 = vmatprep.subr.mxu0 0.0
  %2029 = vmatpush1.msra.mxu0 %v1813
  %2030 = vmatprep.subr.mxu0 0.0
  %2031 = vmatpush1.msra.mxu0 0.0
  %2032 = vmatprep.subr.mxu0 0.0
  %2033 = vmatpush1.msra.mxu0 0.0
  %2034 = vmatprep.subr.mxu0 0.0
  %2035 = vmatpush1.msra.mxu0 0.0
  %2036 = vmatprep.subr.mxu0 0.0
  %2037 = vmatpush1.msra.mxu0 0.0
  %2038 = vmatprep.subr.mxu0 0.0
  %2039 = vmatpush1.msra.mxu0 0.0
  %2040 = vmatprep.subr.mxu0 0.0
  %2041 = vmatpush1.msra.mxu0 0.0
  %2042 = vmatprep.subr.mxu0 0.0
  %2043 = vmatpush1.msra.mxu0 0.0
  %2044 = vmatprep.subr.mxu0 0.0
  %2045 = vmatpush1.msra.mxu0 0.0
  %2046 = vmatprep.subr.mxu0 0.0
  %2047 = vmatpush1.msra.mxu0 0.0
  %2048 = vmatprep.subr.mxu0 0.0
  %2049 = vmatpush1.msra.mxu0 0.0
  %2050 = vmatprep.subr.mxu0 0.0
  %2051 = vmatpush1.msra.mxu0 0.0
  %2052 = vmatprep.subr.mxu0 0.0
  %2053 = vmatpush1.msra.mxu0 0.0
  %2054 = vmatprep.subr.mxu0 0.0
  %2055 = vmatpush1.msra.mxu0 0.0
  %2056 = vmatprep.subr.mxu0 0.0
  %2057 = vmatpush1.msra.mxu0 0.0
  %2058 = vmatprep.subr.mxu0 0.0
  %2059 = vmatpush1.msra.mxu0 0.0
  %2060 = vmatprep.subr.mxu0 0.0
  %2061 = vmatpush1.msra.mxu0 0.0
  %2062 = vmatprep.subr.mxu0 0.0
  %2063 = vmatpush1.msra.mxu0 0.0
  %2064 = vmatprep.subr.mxu0 0.0
  %2065 = vmatpush1.msra.mxu0 0.0
  %2066 = vmatprep.subr.mxu0 0.0
  %2067 = vmatpush1.msra.mxu0 0.0
  %2068 = vmatprep.subr.mxu0 0.0
  %2069 = vmatpush1.msra.mxu0 0.0
  %2070 = vmatprep.subr.mxu0 0.0
  %2071 = vmatpush1.msra.mxu0 0.0
  %2072 = vmatprep.subr.mxu0 0.0
  %2073 = vmatpush1.msra.mxu0 0.0
  %2074 = vmatprep.subr.mxu0 0.0
  %2075 = vmatpush1.msra.mxu0 0.0
  %2076 = vmatprep.subr.mxu0 0.0
  %2077 = vmatpush1.msra.mxu0 0.0
  %2078 = vmatprep.mubr.f32.mxu0 0.0
  %2079 = vmatmul.mubr.f32.gmra.mrb[0].mxu0 %v1823
  %v2080 = vpop.f32.mrb[0].mxu0
  %v2081 = vadd.f32 %v1819, %v2080
  %v2082 = vpop.f32.mrb[0].mxu0
  %2083 = vmatprep.mubr.f32.mxu0 0.0
  %2084 = vmatmul.mubr.f32.gmra.mrb[0].mxu0 %v1826
  %v2085 = vpop.f32.mrb[0].mxu0
  %v2086 = vadd.f32 %v1819, %v2085
  %v2087 = vpop.f32.mrb[0].mxu0
  %2088 = vmatprep.mubr.f32.mxu0 0.0
  %2089 = vmatmul.mubr.f32.gmra.mrb[0].mxu0 %v1829
  %v2090 = vpop.f32.mrb[0].mxu0
  %v2091 = vadd.f32 %v1819, %v2090
  %v2092 = vpop.f32.mrb[0].mxu0
  %2093 = vmatprep.mubr.f32.mxu0 0.0
  %2094 = vmatmul.mubr.f32.gmra.mrb[0].mxu0 %v1832
  %v2095 = vpop.f32.mrb[0].mxu0
  %v2096 = vadd.f32 %v1819, %v2095
  %v2097 = vpop.f32.mrb[0].mxu0
  %2098 = vmatprep.mubr.f32.mxu0 0.0
  %2099 = vmatmul.mubr.f32.gmra.mrb[0].mxu0 %v1835
  %v2100 = vpop.f32.mrb[0].mxu0
  %v2101 = vadd.f32 %v1819, %v2100
  %v2102 = vpop.f32.mrb[0].mxu0
  %2103 = vmatprep.mubr.f32.mxu0 0.0
  %2104 = vmatmul.mubr.f32.gmra.mrb[0].mxu0 %v1838
  %v2105 = vpop.f32.mrb[0].mxu0
  %v2106 = vadd.f32 %v1819, %v2105
  %v2107 = vpop.f32.mrb[0].mxu0
  %2108 = vmatprep.mubr.f32.mxu0 0.0
  %2109 = vmatmul.mubr.f32.gmra.mrb[0].mxu0 %v1841
  %v2110 = vpop.f32.mrb[0].mxu0
  %v2111 = vadd.f32 %v1819, %v2110
  %v2112 = vpop.f32.mrb[0].mxu0
  %2113 = vmatprep.mubr.f32.mxu0 0.0
  %2114 = vmatmul.mubr.f32.gmra.mrb[0].mxu0 %v1844
  %v2115 = vpop.f32.mrb[0].mxu0
  %v2116 = vadd.f32 %v1819, %v2115
  %v2117 = vpop.f32.mrb[0].mxu0
  %2118 = vmatprep.mubr.f32.mxu0 0.0
  %2119 = vmatmul.mubr.f32.gmra.mrb[0].mxu0 %v1847
  %v2120 = vpop.f32.mrb[0].mxu0
  %v2121 = vadd.f32 %v1819, %v2120
  %v2122 = vpop.f32.mrb[0].mxu0
  %2123 = vmatprep.mubr.f32.mxu0 0.0
  %2124 = vmatmul.mubr.f32.gmra.mrb[0].mxu0 %v1850
  %v2125 = vpop.f32.mrb[0].mxu0
  %v2126 = vadd.f32 %v1819, %v2125
  %v2127 = vpop.f32.mrb[0].mxu0
  %2128 = vmatprep.mubr.f32.mxu0 0.0
  %2129 = vmatmul.mubr.f32.gmra.mrb[0].mxu0 %v1853
  %v2130 = vpop.f32.mrb[0].mxu0
  %v2131 = vadd.f32 %v1819, %v2130
  %v2132 = vpop.f32.mrb[0].mxu0
  %2133 = vmatprep.mubr.f32.mxu0 0.0
  %2134 = vmatmul.mubr.f32.gmra.mrb[0].mxu0 %v1856
  %v2135 = vpop.f32.mrb[0].mxu0
  %v2136 = vadd.f32 %v1819, %v2135
  %v2137 = vpop.f32.mrb[0].mxu0
  %2138 = vmatprep.mubr.f32.mxu0 0.0
  %2139 = vmatmul.mubr.f32.gmra.mrb[0].mxu0 %v1859
  %v2140 = vpop.f32.mrb[0].mxu0
  %v2141 = vadd.f32 %v1819, %v2140
  %v2142 = vpop.f32.mrb[0].mxu0
  %2143 = vmatprep.mubr.f32.mxu0 0.0
  %2144 = vmatmul.mubr.f32.gmra.mrb[0].mxu0 %v1862
  %v2145 = vpop.f32.mrb[0].mxu0
  %v2146 = vadd.f32 %v1819, %v2145
  %v2147 = vpop.f32.mrb[0].mxu0
  %2148 = vmatprep.mubr.f32.mxu0 0.0
  %2149 = vmatmul.mubr.f32.gmra.mrb[0].mxu0 %v1865
  %v2150 = vpop.f32.mrb[0].mxu0
  %v2151 = vadd.f32 %v1819, %v2150
  %v2152 = vpop.f32.mrb[0].mxu0
  %2153 = vmatprep.mubr.f32.mxu0 0.0
  %2154 = vmatmul.mubr.f32.gmra.mrb[0].mxu0 %v1868
  %v2155 = vpop.f32.mrb[0].mxu0
  %v2156 = vadd.f32 %v1819, %v2155
  %v2157 = vpop.f32.mrb[0].mxu0
  %2158 = vmatprep.mubr.f32.mxu0 0.0
  %2159 = vmatmul.mubr.f32.gmra.mrb[0].mxu0 %v1871
  %v2160 = vpop.f32.mrb[0].mxu0
  %v2161 = vadd.f32 %v1819, %v2160
  %v2162 = vpop.f32.mrb[0].mxu0
  %2163 = vmatprep.mubr.f32.mxu0 0.0
  %2164 = vmatmul.mubr.f32.gmra.mrb[0].mxu0 %v1874
  %v2165 = vpop.f32.mrb[0].mxu0
  %v2166 = vadd.f32 %v1819, %v2165
  %v2167 = vpop.f32.mrb[0].mxu0
  %2168 = vmatprep.mubr.f32.mxu0 0.0
  %2169 = vmatmul.mubr.f32.gmra.mrb[0].mxu0 %v1877
  %v2170 = vpop.f32.mrb[0].mxu0
  %v2171 = vadd.f32 %v1819, %v2170
  %v2172 = vpop.f32.mrb[0].mxu0
  %2173 = vmatprep.mubr.f32.mxu0 0.0
  %2174 = vmatmul.mubr.f32.gmra.mrb[0].mxu0 %v1880
  %v2175 = vpop.f32.mrb[0].mxu0
  %v2176 = vadd.f32 %v1819, %v2175
  %v2177 = vpop.f32.mrb[0].mxu0
  %2178 = vmatprep.mubr.f32.mxu0 0.0
  %2179 = vmatmul.mubr.f32.gmra.mrb[0].mxu0 %v1883
  %v2180 = vpop.f32.mrb[0].mxu0
  %v2181 = vadd.f32 %v1819, %v2180
  %v2182 = vpop.f32.mrb[0].mxu0
  %2183 = vmatprep.mubr.f32.mxu0 0.0
  %2184 = vmatmul.mubr.f32.gmra.mrb[0].mxu0 %v1886
  %v2185 = vpop.f32.mrb[0].mxu0
  %v2186 = vadd.f32 %v1819, %v2185
  %v2187 = vpop.f32.mrb[0].mxu0
  %2188 = vmatprep.mubr.f32.mxu0 0.0
  %2189 = vmatmul.mubr.f32.gmra.mrb[0].mxu0 %v1889
  %v2190 = vpop.f32.mrb[0].mxu0
  %v2191 = vadd.f32 %v1819, %v2190
  %v2192 = vpop.f32.mrb[0].mxu0
  %2193 = vmatprep.mubr.f32.mxu0 0.0
  %2194 = vmatmul.mubr.f32.gmra.mrb[0].mxu0 %v1892
  %v2195 = vpop.f32.mrb[0].mxu0
  %v2196 = vadd.f32 %v1819, %v2195
  %v2197 = vpop.f32.mrb[0].mxu0
  %2198 = vmatprep.mubr.f32.mxu0 0.0
  %2199 = vmatmul.mubr.f32.gmra.mrb[0].mxu0 %v1895
  %v2200 = vpop.f32.mrb[0].mxu0
  %v2201 = vadd.f32 %v1819, %v2200
  %v2202 = vpop.f32.mrb[0].mxu0
  %2203 = vmatprep.mubr.f32.mxu0 0.0
  %2204 = vmatmul.mubr.f32.gmra.mrb[0].mxu0 %v1898
  %v2205 = vpop.f32.mrb[0].mxu0
  %v2206 = vadd.f32 %v1819, %v2205
  %v2207 = vpop.f32.mrb[0].mxu0
  %2208 = vmatprep.mubr.f32.mxu0 0.0
  %2209 = vmatmul.mubr.f32.gmra.mrb[0].mxu0 %v1901
  %v2210 = vpop.f32.mrb[0].mxu0
  %v2211 = vadd.f32 %v1819, %v2210
  %v2212 = vpop.f32.mrb[0].mxu0
  %2213 = vmatprep.mubr.f32.mxu0 0.0
  %2214 = vmatmul.mubr.f32.gmra.mrb[0].mxu0 %v1904
  %v2215 = vpop.f32.mrb[0].mxu0
  %v2216 = vadd.f32 %v1819, %v2215
  %v2217 = vpop.f32.mrb[0].mxu0
  %2218 = vmatprep.mubr.f32.mxu0 0.0
  %2219 = vmatmul.mubr.f32.gmra.mrb[0].mxu0 %v1907
  %v2220 = vpop.f32.mrb[0].mxu0
  %v2221 = vadd.f32 %v1819, %v2220
  %v2222 = vpop.f32.mrb[0].mxu0
  %2223 = vmatprep.mubr.f32.mxu0 0.0
  %2224 = vmatmul.mubr.f32.gmra.mrb[0].mxu0 %v1910
  %v2225 = vpop.f32.mrb[0].mxu0
  %v2226 = vadd.f32 %v1819, %v2225
  %v2227 = vpop.f32.mrb[0].mxu0
  %2228 = vmatprep.mubr.f32.mxu0 0.0
  %2229 = vmatmul.mubr.f32.gmra.mrb[0].mxu0 %v1913
  %v2230 = vpop.f32.mrb[0].mxu0
  %v2231 = vadd.f32 %v1819, %v2230
  %v2232 = vpop.f32.mrb[0].mxu0
  %2233 = vmatprep.mubr.f32.mxu0 0.0
  %2234 = vmatmul.mubr.f32.gmra.mrb[0].mxu0 %v1916
  %v2235 = vpop.f32.mrb[0].mxu0
  %v2236 = vadd.f32 %v1819, %v2235
  %v2237 = vpop.f32.mrb[0].mxu0
  %2238 = vmatprep.mubr.f32.mxu0 0.0
  %2239 = vmatmul.mubr.f32.gmra.mrb[0].mxu0 %v1919
  %v2240 = vpop.f32.mrb[0].mxu0
  %v2241 = vadd.f32 %v1819, %v2240
  %v2242 = vpop.f32.mrb[0].mxu0
  %2243 = vmatprep.mubr.f32.mxu0 0.0
  %2244 = vmatmul.mubr.f32.gmra.mrb[0].mxu0 %v1922
  %v2245 = vpop.f32.mrb[0].mxu0
  %v2246 = vadd.f32 %v1819, %v2245
  %v2247 = vpop.f32.mrb[0].mxu0
  %2248 = vmatprep.mubr.f32.mxu0 0.0
  %2249 = vmatmul.mubr.f32.gmra.mrb[0].mxu0 %v1925
  %v2250 = vpop.f32.mrb[0].mxu0
  %v2251 = vadd.f32 %v1819, %v2250
  %v2252 = vpop.f32.mrb[0].mxu0
  %2253 = vmatprep.mubr.f32.mxu0 0.0
  %2254 = vmatmul.mubr.f32.gmra.mrb[0].mxu0 %v1928
  %v2255 = vpop.f32.mrb[0].mxu0
  %v2256 = vadd.f32 %v1819, %v2255
  %v2257 = vpop.f32.mrb[0].mxu0
  %2258 = vmatprep.mubr.f32.mxu0 0.0
  %2259 = vmatmul.mubr.f32.gmra.mrb[0].mxu0 %v1931
  %v2260 = vpop.f32.mrb[0].mxu0
  %v2261 = vadd.f32 %v1819, %v2260
  %v2262 = vpop.f32.mrb[0].mxu0
  %2263 = vmatprep.mubr.f32.mxu0 0.0
  %2264 = vmatmul.mubr.f32.gmra.mrb[0].mxu0 %v1934
  %v2265 = vpop.f32.mrb[0].mxu0
  %v2266 = vadd.f32 %v1819, %v2265
  %v2267 = vpop.f32.mrb[0].mxu0
  %2268 = vmatprep.mubr.f32.mxu0 0.0
  %2269 = vmatmul.mubr.f32.gmra.mrb[0].mxu0 %v1937
  %v2270 = vpop.f32.mrb[0].mxu0
  %v2271 = vadd.f32 %v1819, %v2270
  %v2272 = vpop.f32.mrb[0].mxu0
  %2273 = vmatprep.mubr.f32.mxu0 0.0
  %2274 = vmatmul.mubr.f32.gmra.mrb[0].mxu0 %v1940
  %v2275 = vpop.f32.mrb[0].mxu0
  %v2276 = vadd.f32 %v1819, %v2275
  %v2277 = vpop.f32.mrb[0].mxu0
  %2278 = vmatprep.mubr.f32.mxu0 0.0
  %2279 = vmatmul.mubr.f32.gmra.mrb[0].mxu0 %v1943
  %v2280 = vpop.f32.mrb[0].mxu0
  %v2281 = vadd.f32 %v1819, %v2280
  %v2282 = vpop.f32.mrb[0].mxu0
  %2283 = vmatprep.mubr.f32.mxu0 0.0
  %2284 = vmatmul.mubr.f32.gmra.mrb[0].mxu0 %v1946
  %v2285 = vpop.f32.mrb[0].mxu0
  %v2286 = vadd.f32 %v1819, %v2285
  %v2287 = vpop.f32.mrb[0].mxu0
  %2288 = vmatprep.mubr.f32.mxu0 0.0
  %2289 = vmatmul.mubr.f32.gmra.mrb[0].mxu0 %v1949
  %v2290 = vpop.f32.mrb[0].mxu0
  %v2291 = vadd.f32 %v1819, %v2290
  %v2292 = vpop.f32.mrb[0].mxu0
  %2293 = vmatprep.mubr.f32.mxu0 0.0
  %2294 = vmatmul.mubr.f32.gmra.mrb[0].mxu0 %v1952
  %v2295 = vpop.f32.mrb[0].mxu0
  %v2296 = vadd.f32 %v1819, %v2295
  %v2297 = vpop.f32.mrb[0].mxu0
  %2298 = vmatprep.mubr.f32.mxu0 0.0
  %2299 = vmatmul.mubr.f32.gmra.mrb[0].mxu0 %v1955
  %v2300 = vpop.f32.mrb[0].mxu0
  %v2301 = vadd.f32 %v1819, %v2300
  %v2302 = vpop.f32.mrb[0].mxu0
  %2303 = vmatprep.mubr.f32.mxu0 0.0
  %2304 = vmatmul.mubr.f32.gmra.mrb[0].mxu0 %v1958
  %v2305 = vpop.f32.mrb[0].mxu0
  %v2306 = vadd.f32 %v1819, %v2305
  %v2307 = vpop.f32.mrb[0].mxu0
  %2308 = vmatprep.mubr.f32.mxu0 0.0
  %2309 = vmatmul.mubr.f32.gmra.mrb[0].mxu0 %v1961
  %v2310 = vpop.f32.mrb[0].mxu0
  %v2311 = vadd.f32 %v1819, %v2310
  %v2312 = vpop.f32.mrb[0].mxu0
  %2313 = vmatprep.mubr.f32.mxu0 0.0
  %2314 = vmatmul.mubr.f32.gmra.mrb[0].mxu0 %v1964
  %v2315 = vpop.f32.mrb[0].mxu0
  %v2316 = vadd.f32 %v1819, %v2315
  %v2317 = vpop.f32.mrb[0].mxu0
  %2318 = vmatprep.mubr.f32.mxu0 0.0
  %2319 = vmatmul.mubr.f32.gmra.mrb[0].mxu0 %v1967
  %v2320 = vpop.f32.mrb[0].mxu0
  %v2321 = vadd.f32 %v1819, %v2320
  %v2322 = vpop.f32.mrb[0].mxu0
  %2323 = vmatprep.mubr.f32.mxu0 0.0
  %2324 = vmatmul.mubr.f32.gmra.mrb[0].mxu0 %v1970
  %v2325 = vpop.f32.mrb[0].mxu0
  %v2326 = vadd.f32 %v1819, %v2325
  %v2327 = vpop.f32.mrb[0].mxu0
  %2328 = vmatprep.mubr.f32.mxu0 0.0
  %2329 = vmatmul.mubr.f32.gmra.mrb[0].mxu0 %v1973
  %v2330 = vpop.f32.mrb[0].mxu0
  %v2331 = vadd.f32 %v1819, %v2330
  %v2332 = vpop.f32.mrb[0].mxu0
  %2333 = vmatprep.mubr.f32.mxu0 0.0
  %2334 = vmatmul.mubr.f32.gmra.mrb[0].mxu0 %v1976
  %v2335 = vpop.f32.mrb[0].mxu0
  %v2336 = vadd.f32 %v1819, %v2335
  %v2337 = vpop.f32.mrb[0].mxu0
  %2338 = vmatprep.mubr.f32.mxu0 0.0
  %2339 = vmatmul.mubr.f32.gmra.mrb[0].mxu0 %v1979
  %v2340 = vpop.f32.mrb[0].mxu0
  %v2341 = vadd.f32 %v1819, %v2340
  %v2342 = vpop.f32.mrb[0].mxu0
  %2343 = vmatprep.mubr.f32.mxu0 0.0
  %2344 = vmatmul.mubr.f32.gmra.mrb[0].mxu0 %v1982
  %v2345 = vpop.f32.mrb[0].mxu0
  %v2346 = vadd.f32 %v1819, %v2345
  %v2347 = vpop.f32.mrb[0].mxu0
  %2348 = vmatprep.mubr.f32.mxu0 0.0
  %2349 = vmatmul.mubr.f32.gmra.mrb[0].mxu0 %v1985
  %v2350 = vpop.f32.mrb[0].mxu0
  %v2351 = vadd.f32 %v1819, %v2350
  %v2352 = vpop.f32.mrb[0].mxu0
  %2353 = vmatprep.mubr.f32.mxu0 0.0
  %2354 = vmatmul.mubr.f32.gmra.mrb[0].mxu0 %v1988
  %v2355 = vpop.f32.mrb[0].mxu0
  %v2356 = vadd.f32 %v1819, %v2355
  %v2357 = vpop.f32.mrb[0].mxu0
  %2358 = vmatprep.mubr.f32.mxu0 0.0
  %2359 = vmatmul.mubr.f32.gmra.mrb[0].mxu0 %v1991
  %v2360 = vpop.f32.mrb[0].mxu0
  %v2361 = vadd.f32 %v1819, %v2360
  %v2362 = vpop.f32.mrb[0].mxu0
  %2363 = vmatprep.mubr.f32.mxu0 0.0
  %2364 = vmatmul.mubr.f32.gmra.mrb[0].mxu0 %v1994
  %v2365 = vpop.f32.mrb[0].mxu0
  %v2366 = vadd.f32 %v1819, %v2365
  %v2367 = vpop.f32.mrb[0].mxu0
  %2368 = vmatprep.mubr.f32.mxu0 0.0
  %2369 = vmatmul.mubr.f32.gmra.mrb[0].mxu0 %v1997
  %v2370 = vpop.f32.mrb[0].mxu0
  %v2371 = vadd.f32 %v1819, %v2370
  %v2372 = vpop.f32.mrb[0].mxu0
  %2373 = vmatprep.mubr.f32.mxu0 0.0
  %2374 = vmatmul.mubr.f32.gmra.mrb[0].mxu0 %v2000
  %v2375 = vpop.f32.mrb[0].mxu0
  %v2376 = vadd.f32 %v1819, %v2375
  %v2377 = vpop.f32.mrb[0].mxu0
  %2378 = vmatprep.mubr.f32.mxu0 0.0
  %2379 = vmatmul.mubr.f32.gmra.mrb[0].mxu0 %v2003
  %v2380 = vpop.f32.mrb[0].mxu0
  %v2381 = vadd.f32 %v1819, %v2380
  %v2382 = vpop.f32.mrb[0].mxu0
  %2383 = vmatprep.mubr.f32.mxu0 0.0
  %2384 = vmatmul.mubr.f32.gmra.mrb[0].mxu0 %v2006
  %v2385 = vpop.f32.mrb[0].mxu0
  %v2386 = vadd.f32 %v1819, %v2385
  %v2387 = vpop.f32.mrb[0].mxu0
  %2388 = vmatprep.mubr.f32.mxu0 0.0
  %2389 = vmatmul.mubr.f32.gmra.mrb[0].mxu0 %v2009
  %v2390 = vpop.f32.mrb[0].mxu0
  %v2391 = vadd.f32 %v1819, %v2390
  %v2392 = vpop.f32.mrb[0].mxu0
  %2393 = vmatprep.mubr.f32.mxu0 0.0
  %2394 = vmatmul.mubr.f32.gmra.mrb[0].mxu0 %v2012
  %v2395 = vpop.f32.mrb[0].mxu0
  %v2396 = vadd.f32 %v1819, %v2395
  %v2397 = vpop.f32.mrb[0].mxu0
  %2398 = vdwg.mxu0
  %v2399 = vlaneseq
  %v2400 = vand.u32 %v2399, 127
  %v2401 = vxor.u32 %v2081, 2147483648
  %v2402 = vxor.u32 %v2086, 2147483648
  %v2403 = vxor.u32 %v2091, 2147483648
  %v2404 = vxor.u32 %v2096, 2147483648
  %v2405 = vxor.u32 %v2101, 2147483648
  %v2406 = vxor.u32 %v2106, 2147483648
  %v2407 = vxor.u32 %v2111, 2147483648
  %v2408 = vxor.u32 %v2116, 2147483648
  %v2409 = vxor.u32 %v2121, 2147483648
  %v2410 = vxor.u32 %v2126, 2147483648
  %v2411 = vxor.u32 %v2131, 2147483648
  %v2412 = vxor.u32 %v2136, 2147483648
  %v2413 = vxor.u32 %v2141, 2147483648
  %v2414 = vxor.u32 %v2146, 2147483648
  %v2415 = vxor.u32 %v2151, 2147483648
  %v2416 = vxor.u32 %v2156, 2147483648
  %v2417 = vxor.u32 %v2161, 2147483648
  %v2418 = vxor.u32 %v2166, 2147483648
  %v2419 = vxor.u32 %v2171, 2147483648
  %v2420 = vxor.u32 %v2176, 2147483648
  %v2421 = vxor.u32 %v2181, 2147483648
  %v2422 = vxor.u32 %v2186, 2147483648
  %v2423 = vxor.u32 %v2191, 2147483648
  %v2424 = vxor.u32 %v2196, 2147483648
  %v2425 = vxor.u32 %v2201, 2147483648
  %v2426 = vxor.u32 %v2206, 2147483648
  %v2427 = vxor.u32 %v2211, 2147483648
  %v2428 = vxor.u32 %v2216, 2147483648
  %v2429 = vxor.u32 %v2221, 2147483648
  %v2430 = vxor.u32 %v2226, 2147483648
  %v2431 = vxor.u32 %v2231, 2147483648
  %v2432 = vxor.u32 %v2236, 2147483648
  %v2433 = vxor.u32 %v2241, 2147483648
  %v2434 = vxor.u32 %v2246, 2147483648
  %v2435 = vxor.u32 %v2251, 2147483648
  %v2436 = vxor.u32 %v2256, 2147483648
  %v2437 = vxor.u32 %v2261, 2147483648
  %v2438 = vxor.u32 %v2266, 2147483648
  %v2439 = vxor.u32 %v2271, 2147483648
  %v2440 = vxor.u32 %v2276, 2147483648
  %v2441 = vxor.u32 %v2281, 2147483648
  %v2442 = vxor.u32 %v2286, 2147483648
  %v2443 = vxor.u32 %v2291, 2147483648
  %v2444 = vxor.u32 %v2296, 2147483648
  %v2445 = vxor.u32 %v2301, 2147483648
  %v2446 = vxor.u32 %v2306, 2147483648
  %v2447 = vxor.u32 %v2311, 2147483648
  %v2448 = vxor.u32 %v2316, 2147483648
  %v2449 = vxor.u32 %v2321, 2147483648
  %v2450 = vxor.u32 %v2326, 2147483648
  %v2451 = vxor.u32 %v2331, 2147483648
  %v2452 = vxor.u32 %v2336, 2147483648
  %v2453 = vxor.u32 %v2341, 2147483648
  %v2454 = vxor.u32 %v2346, 2147483648
  %v2455 = vxor.u32 %v2351, 2147483648
  %v2456 = vxor.u32 %v2356, 2147483648
  %v2457 = vxor.u32 %v2361, 2147483648
  %v2458 = vxor.u32 %v2366, 2147483648
  %v2459 = vxor.u32 %v2371, 2147483648
  %v2460 = vxor.u32 %v2376, 2147483648
  %v2461 = vxor.u32 %v2381, 2147483648
  %v2462 = vxor.u32 %v2386, 2147483648
  %v2463 = vxor.u32 %v2391, 2147483648
  %v2464 = vxor.u32 %v2396, 2147483648
  %v2465 = vmul.f32 %v2401, 1.442695
  %v2466 = vpow.pop %v2465
  %v2467 = vmul.f32 %v2402, 1.442695
  %v2468 = vpow.pop %v2467
  %v2469 = vmul.f32 %v2403, 1.442695
  %v2470 = vpow.pop %v2469
  %v2471 = vmul.f32 %v2404, 1.442695
  %v2472 = vpow.pop %v2471
  %v2473 = vmul.f32 %v2405, 1.442695
  %v2474 = vpow.pop %v2473
  %v2475 = vmul.f32 %v2406, 1.442695
  %v2476 = vpow.pop %v2475
  %v2477 = vmul.f32 %v2407, 1.442695
  %v2478 = vpow.pop %v2477
  %v2479 = vmul.f32 %v2408, 1.442695
  %v2480 = vpow.pop %v2479
  %v2481 = vmul.f32 %v2409, 1.442695
  %v2482 = vpow.pop %v2481
  %v2483 = vmul.f32 %v2410, 1.442695
  %v2484 = vpow.pop %v2483
  %v2485 = vmul.f32 %v2411, 1.442695
  %v2486 = vpow.pop %v2485
  %v2487 = vmul.f32 %v2412, 1.442695
  %v2488 = vpow.pop %v2487
  %v2489 = vmul.f32 %v2413, 1.442695
  %v2490 = vpow.pop %v2489
  %v2491 = vmul.f32 %v2414, 1.442695
  %v2492 = vpow.pop %v2491
  %v2493 = vmul.f32 %v2415, 1.442695
  %v2494 = vpow.pop %v2493
  %v2495 = vmul.f32 %v2416, 1.442695
  %v2496 = vpow.pop %v2495
  %v2497 = vmul.f32 %v2417, 1.442695
  %v2498 = vpow.pop %v2497
  %v2499 = vmul.f32 %v2418, 1.442695
  %v2500 = vpow.pop %v2499
  %v2501 = vmul.f32 %v2419, 1.442695
  %v2502 = vpow.pop %v2501
  %v2503 = vmul.f32 %v2420, 1.442695
  %v2504 = vpow.pop %v2503
  %v2505 = vmul.f32 %v2421, 1.442695
  %v2506 = vpow.pop %v2505
  %v2507 = vmul.f32 %v2422, 1.442695
  %v2508 = vpow.pop %v2507
  %v2509 = vmul.f32 %v2423, 1.442695
  %v2510 = vpow.pop %v2509
  %v2511 = vmul.f32 %v2424, 1.442695
  %v2512 = vpow.pop %v2511
  %v2513 = vmul.f32 %v2425, 1.442695
  %v2514 = vpow.pop %v2513
  %v2515 = vmul.f32 %v2426, 1.442695
  %v2516 = vpow.pop %v2515
  %v2517 = vmul.f32 %v2427, 1.442695
  %v2518 = vpow.pop %v2517
  %v2519 = vmul.f32 %v2428, 1.442695
  %v2520 = vpow.pop %v2519
  %v2521 = vmul.f32 %v2429, 1.442695
  %v2522 = vpow.pop %v2521
  %v2523 = vmul.f32 %v2430, 1.442695
  %v2524 = vpow.pop %v2523
  %v2525 = vmul.f32 %v2431, 1.442695
  %v2526 = vpow.pop %v2525
  %v2527 = vmul.f32 %v2432, 1.442695
  %v2528 = vpow.pop %v2527
  %v2529 = vmul.f32 %v2433, 1.442695
  %v2530 = vpow.pop %v2529
  %v2531 = vmul.f32 %v2434, 1.442695
  %v2532 = vpow.pop %v2531
  %v2533 = vmul.f32 %v2435, 1.442695
  %v2534 = vpow.pop %v2533
  %v2535 = vmul.f32 %v2436, 1.442695
  %v2536 = vpow.pop %v2535
  %v2537 = vmul.f32 %v2437, 1.442695
  %v2538 = vpow.pop %v2537
  %v2539 = vmul.f32 %v2438, 1.442695
  %v2540 = vpow.pop %v2539
  %v2541 = vmul.f32 %v2439, 1.442695
  %v2542 = vpow.pop %v2541
  %v2543 = vmul.f32 %v2440, 1.442695
  %v2544 = vpow.pop %v2543
  %v2545 = vmul.f32 %v2441, 1.442695
  %v2546 = vpow.pop %v2545
  %v2547 = vmul.f32 %v2442, 1.442695
  %v2548 = vpow.pop %v2547
  %v2549 = vmul.f32 %v2443, 1.442695
  %v2550 = vpow.pop %v2549
  %v2551 = vmul.f32 %v2444, 1.442695
  %v2552 = vpow.pop %v2551
  %v2553 = vmul.f32 %v2445, 1.442695
  %v2554 = vpow.pop %v2553
  %v2555 = vmul.f32 %v2446, 1.442695
  %v2556 = vpow.pop %v2555
  %v2557 = vmul.f32 %v2447, 1.442695
  %v2558 = vpow.pop %v2557
  %v2559 = vmul.f32 %v2448, 1.442695
  %v2560 = vpow.pop %v2559
  %v2561 = vmul.f32 %v2449, 1.442695
  %v2562 = vpow.pop %v2561
  %v2563 = vmul.f32 %v2450, 1.442695
  %v2564 = vpow.pop %v2563
  %v2565 = vmul.f32 %v2451, 1.442695
  %v2566 = vpow.pop %v2565
  %v2567 = vmul.f32 %v2452, 1.442695
  %v2568 = vpow.pop %v2567
  %v2569 = vmul.f32 %v2453, 1.442695
  %v2570 = vpow.pop %v2569
  %v2571 = vmul.f32 %v2454, 1.442695
  %v2572 = vpow.pop %v2571
  %v2573 = vmul.f32 %v2455, 1.442695
  %v2574 = vpow.pop %v2573
  %v2575 = vmul.f32 %v2456, 1.442695
  %v2576 = vpow.pop %v2575
  %v2577 = vmul.f32 %v2457, 1.442695
  %v2578 = vpow.pop %v2577
  %v2579 = vmul.f32 %v2458, 1.442695
  %v2580 = vpow.pop %v2579
  %v2581 = vmul.f32 %v2459, 1.442695
  %v2582 = vpow.pop %v2581
  %v2583 = vmul.f32 %v2460, 1.442695
  %v2584 = vpow.pop %v2583
  %v2585 = vmul.f32 %v2461, 1.442695
  %v2586 = vpow.pop %v2585
  %v2587 = vmul.f32 %v2462, 1.442695
  %v2588 = vpow.pop %v2587
  %v2589 = vmul.f32 %v2463, 1.442695
  %v2590 = vpow.pop %v2589
  %v2591 = vmul.f32 %v2464, 1.442695
  %v2592 = vpow.pop %v2591
  %v2593 = vadd.f32 %v2466, 1.0
  %v2594 = vadd.f32 %v2468, 1.0
  %v2595 = vadd.f32 %v2470, 1.0
  %v2596 = vadd.f32 %v2472, 1.0
  %v2597 = vadd.f32 %v2474, 1.0
  %v2598 = vadd.f32 %v2476, 1.0
  %v2599 = vadd.f32 %v2478, 1.0
  %v2600 = vadd.f32 %v2480, 1.0
  %v2601 = vadd.f32 %v2482, 1.0
  %v2602 = vadd.f32 %v2484, 1.0
  %v2603 = vadd.f32 %v2486, 1.0
  %v2604 = vadd.f32 %v2488, 1.0
  %v2605 = vadd.f32 %v2490, 1.0
  %v2606 = vadd.f32 %v2492, 1.0
  %v2607 = vadd.f32 %v2494, 1.0
  %v2608 = vadd.f32 %v2496, 1.0
  %v2609 = vadd.f32 %v2498, 1.0
  %v2610 = vadd.f32 %v2500, 1.0
  %v2611 = vadd.f32 %v2502, 1.0
  %v2612 = vadd.f32 %v2504, 1.0
  %v2613 = vadd.f32 %v2506, 1.0
  %v2614 = vadd.f32 %v2508, 1.0
  %v2615 = vadd.f32 %v2510, 1.0
  %v2616 = vadd.f32 %v2512, 1.0
  %v2617 = vadd.f32 %v2514, 1.0
  %v2618 = vadd.f32 %v2516, 1.0
  %v2619 = vadd.f32 %v2518, 1.0
  %v2620 = vadd.f32 %v2520, 1.0
  %v2621 = vadd.f32 %v2522, 1.0
  %v2622 = vadd.f32 %v2524, 1.0
  %v2623 = vadd.f32 %v2526, 1.0
  %v2624 = vadd.f32 %v2528, 1.0
  %v2625 = vadd.f32 %v2530, 1.0
  %v2626 = vadd.f32 %v2532, 1.0
  %v2627 = vadd.f32 %v2534, 1.0
  %v2628 = vadd.f32 %v2536, 1.0
  %v2629 = vadd.f32 %v2538, 1.0
  %v2630 = vadd.f32 %v2540, 1.0
  %v2631 = vadd.f32 %v2542, 1.0
  %v2632 = vadd.f32 %v2544, 1.0
  %v2633 = vadd.f32 %v2546, 1.0
  %v2634 = vadd.f32 %v2548, 1.0
  %v2635 = vadd.f32 %v2550, 1.0
  %v2636 = vadd.f32 %v2552, 1.0
  %v2637 = vadd.f32 %v2554, 1.0
  %v2638 = vadd.f32 %v2556, 1.0
  %v2639 = vadd.f32 %v2558, 1.0
  %v2640 = vadd.f32 %v2560, 1.0
  %v2641 = vadd.f32 %v2562, 1.0
  %v2642 = vadd.f32 %v2564, 1.0
  %v2643 = vadd.f32 %v2566, 1.0
  %v2644 = vadd.f32 %v2568, 1.0
  %v2645 = vadd.f32 %v2570, 1.0
  %v2646 = vadd.f32 %v2572, 1.0
  %v2647 = vadd.f32 %v2574, 1.0
  %v2648 = vadd.f32 %v2576, 1.0
  %v2649 = vadd.f32 %v2578, 1.0
  %v2650 = vadd.f32 %v2580, 1.0
  %v2651 = vadd.f32 %v2582, 1.0
  %v2652 = vadd.f32 %v2584, 1.0
  %v2653 = vadd.f32 %v2586, 1.0
  %v2654 = vadd.f32 %v2588, 1.0
  %v2655 = vadd.f32 %v2590, 1.0
  %v2656 = vadd.f32 %v2592, 1.0
  %v2657 = vrcp.pop %v2593
  %v2658 = vmul.f32 1.0, %v2657
  %v2659 = vrcp.pop %v2594
  %v2660 = vmul.f32 1.0, %v2659
  %v2661 = vrcp.pop %v2595
  %v2662 = vmul.f32 1.0, %v2661
  %v2663 = vrcp.pop %v2596
  %v2664 = vmul.f32 1.0, %v2663
  %v2665 = vrcp.pop %v2597
  %v2666 = vmul.f32 1.0, %v2665
  %v2667 = vrcp.pop %v2598
  %v2668 = vmul.f32 1.0, %v2667
  %v2669 = vrcp.pop %v2599
  %v2670 = vmul.f32 1.0, %v2669
  %v2671 = vrcp.pop %v2600
  %v2672 = vmul.f32 1.0, %v2671
  %v2673 = vrcp.pop %v2601
  %v2674 = vmul.f32 1.0, %v2673
  %v2675 = vrcp.pop %v2602
  %v2676 = vmul.f32 1.0, %v2675
  %v2677 = vrcp.pop %v2603
  %v2678 = vmul.f32 1.0, %v2677
  %v2679 = vrcp.pop %v2604
  %v2680 = vmul.f32 1.0, %v2679
  %v2681 = vrcp.pop %v2605
  %v2682 = vmul.f32 1.0, %v2681
  %v2683 = vrcp.pop %v2606
  %v2684 = vmul.f32 1.0, %v2683
  %v2685 = vrcp.pop %v2607
  %v2686 = vmul.f32 1.0, %v2685
  %v2687 = vrcp.pop %v2608
  %v2688 = vmul.f32 1.0, %v2687
  %v2689 = vrcp.pop %v2609
  %v2690 = vmul.f32 1.0, %v2689
  %v2691 = vrcp.pop %v2610
  %v2692 = vmul.f32 1.0, %v2691
  %v2693 = vrcp.pop %v2611
  %v2694 = vmul.f32 1.0, %v2693
  %v2695 = vrcp.pop %v2612
  %v2696 = vmul.f32 1.0, %v2695
  %v2697 = vrcp.pop %v2613
  %v2698 = vmul.f32 1.0, %v2697
  %v2699 = vrcp.pop %v2614
  %v2700 = vmul.f32 1.0, %v2699
  %v2701 = vrcp.pop %v2615
  %v2702 = vmul.f32 1.0, %v2701
  %v2703 = vrcp.pop %v2616
  %v2704 = vmul.f32 1.0, %v2703
  %v2705 = vrcp.pop %v2617
  %v2706 = vmul.f32 1.0, %v2705
  %v2707 = vrcp.pop %v2618
  %v2708 = vmul.f32 1.0, %v2707
  %v2709 = vrcp.pop %v2619
  %v2710 = vmul.f32 1.0, %v2709
  %v2711 = vrcp.pop %v2620
  %v2712 = vmul.f32 1.0, %v2711
  %v2713 = vrcp.pop %v2621
  %v2714 = vmul.f32 1.0, %v2713
  %v2715 = vrcp.pop %v2622
  %v2716 = vmul.f32 1.0, %v2715
  %v2717 = vrcp.pop %v2623
  %v2718 = vmul.f32 1.0, %v2717
  %v2719 = vrcp.pop %v2624
  %v2720 = vmul.f32 1.0, %v2719
  %v2721 = vrcp.pop %v2625
  %v2722 = vmul.f32 1.0, %v2721
  %v2723 = vrcp.pop %v2626
  %v2724 = vmul.f32 1.0, %v2723
  %v2725 = vrcp.pop %v2627
  %v2726 = vmul.f32 1.0, %v2725
  %v2727 = vrcp.pop %v2628
  %v2728 = vmul.f32 1.0, %v2727
  %v2729 = vrcp.pop %v2629
  %v2730 = vmul.f32 1.0, %v2729
  %v2731 = vrcp.pop %v2630
  %v2732 = vmul.f32 1.0, %v2731
  %v2733 = vrcp.pop %v2631
  %v2734 = vmul.f32 1.0, %v2733
  %v2735 = vrcp.pop %v2632
  %v2736 = vmul.f32 1.0, %v2735
  %v2737 = vrcp.pop %v2633
  %v2738 = vmul.f32 1.0, %v2737
  %v2739 = vrcp.pop %v2634
  %v2740 = vmul.f32 1.0, %v2739
  %v2741 = vrcp.pop %v2635
  %v2742 = vmul.f32 1.0, %v2741
  %v2743 = vrcp.pop %v2636
  %v2744 = vmul.f32 1.0, %v2743
  %v2745 = vrcp.pop %v2637
  %v2746 = vmul.f32 1.0, %v2745
  %v2747 = vrcp.pop %v2638
  %v2748 = vmul.f32 1.0, %v2747
  %v2749 = vrcp.pop %v2639
  %v2750 = vmul.f32 1.0, %v2749
  %v2751 = vrcp.pop %v2640
  %v2752 = vmul.f32 1.0, %v2751
  %v2753 = vrcp.pop %v2641
  %v2754 = vmul.f32 1.0, %v2753
  %v2755 = vrcp.pop %v2642
  %v2756 = vmul.f32 1.0, %v2755
  %v2757 = vrcp.pop %v2643
  %v2758 = vmul.f32 1.0, %v2757
  %v2759 = vrcp.pop %v2644
  %v2760 = vmul.f32 1.0, %v2759
  %v2761 = vrcp.pop %v2645
  %v2762 = vmul.f32 1.0, %v2761
  %v2763 = vrcp.pop %v2646
  %v2764 = vmul.f32 1.0, %v2763
  %v2765 = vrcp.pop %v2647
  %v2766 = vmul.f32 1.0, %v2765
  %v2767 = vrcp.pop %v2648
  %v2768 = vmul.f32 1.0, %v2767
  %v2769 = vrcp.pop %v2649
  %v2770 = vmul.f32 1.0, %v2769
  %v2771 = vrcp.pop %v2650
  %v2772 = vmul.f32 1.0, %v2771
  %v2773 = vrcp.pop %v2651
  %v2774 = vmul.f32 1.0, %v2773
  %v2775 = vrcp.pop %v2652
  %v2776 = vmul.f32 1.0, %v2775
  %v2777 = vrcp.pop %v2653
  %v2778 = vmul.f32 1.0, %v2777
  %v2779 = vrcp.pop %v2654
  %v2780 = vmul.f32 1.0, %v2779
  %v2781 = vrcp.pop %v2655
  %v2782 = vmul.f32 1.0, %v2781
  %v2783 = vrcp.pop %v2656
  %v2784 = vmul.f32 1.0, %v2783
  %v2785 = vmul.f32 %v2658, 1.002
  %v2786 = vmul.f32 %v2660, 1.002
  %v2787 = vmul.f32 %v2662, 1.002
  %v2788 = vmul.f32 %v2664, 1.002
  %v2789 = vmul.f32 %v2666, 1.002
  %v2790 = vmul.f32 %v2668, 1.002
  %v2791 = vmul.f32 %v2670, 1.002
  %v2792 = vmul.f32 %v2672, 1.002
  %v2793 = vmul.f32 %v2674, 1.002
  %v2794 = vmul.f32 %v2676, 1.002
  %v2795 = vmul.f32 %v2678, 1.002
  %v2796 = vmul.f32 %v2680, 1.002
  %v2797 = vmul.f32 %v2682, 1.002
  %v2798 = vmul.f32 %v2684, 1.002
  %v2799 = vmul.f32 %v2686, 1.002
  %v2800 = vmul.f32 %v2688, 1.002
  %v2801 = vmul.f32 %v2690, 1.002
  %v2802 = vmul.f32 %v2692, 1.002
  %v2803 = vmul.f32 %v2694, 1.002
  %v2804 = vmul.f32 %v2696, 1.002
  %v2805 = vmul.f32 %v2698, 1.002
  %v2806 = vmul.f32 %v2700, 1.002
  %v2807 = vmul.f32 %v2702, 1.002
  %v2808 = vmul.f32 %v2704, 1.002
  %v2809 = vmul.f32 %v2706, 1.002
  %v2810 = vmul.f32 %v2708, 1.002
  %v2811 = vmul.f32 %v2710, 1.002
  %v2812 = vmul.f32 %v2712, 1.002
  %v2813 = vmul.f32 %v2714, 1.002
  %v2814 = vmul.f32 %v2716, 1.002
  %v2815 = vmul.f32 %v2718, 1.002
  %v2816 = vmul.f32 %v2720, 1.002
  %v2817 = vmul.f32 %v2722, 1.002
  %v2818 = vmul.f32 %v2724, 1.002
  %v2819 = vmul.f32 %v2726, 1.002
  %v2820 = vmul.f32 %v2728, 1.002
  %v2821 = vmul.f32 %v2730, 1.002
  %v2822 = vmul.f32 %v2732, 1.002
  %v2823 = vmul.f32 %v2734, 1.002
  %v2824 = vmul.f32 %v2736, 1.002
  %v2825 = vmul.f32 %v2738, 1.002
  %v2826 = vmul.f32 %v2740, 1.002
  %v2827 = vmul.f32 %v2742, 1.002
  %v2828 = vmul.f32 %v2744, 1.002
  %v2829 = vmul.f32 %v2746, 1.002
  %v2830 = vmul.f32 %v2748, 1.002
  %v2831 = vmul.f32 %v2750, 1.002
  %v2832 = vmul.f32 %v2752, 1.002
  %v2833 = vmul.f32 %v2754, 1.002
  %v2834 = vmul.f32 %v2756, 1.002
  %v2835 = vmul.f32 %v2758, 1.002
  %v2836 = vmul.f32 %v2760, 1.002
  %v2837 = vmul.f32 %v2762, 1.002
  %v2838 = vmul.f32 %v2764, 1.002
  %v2839 = vmul.f32 %v2766, 1.002
  %v2840 = vmul.f32 %v2768, 1.002
  %v2841 = vmul.f32 %v2770, 1.002
  %v2842 = vmul.f32 %v2772, 1.002
  %v2843 = vmul.f32 %v2774, 1.002
  %v2844 = vmul.f32 %v2776, 1.002
  %v2845 = vmul.f32 %v2778, 1.002
  %v2846 = vmul.f32 %v2780, 1.002
  %v2847 = vmul.f32 %v2782, 1.002
  %v2848 = vmul.f32 %v2784, 1.002
  %v2849 = vsub.f32 %v2785, 0.001
  %v2850 = vsub.f32 %v2786, 0.001
  %v2851 = vsub.f32 %v2787, 0.001
  %v2852 = vsub.f32 %v2788, 0.001
  %v2853 = vsub.f32 %v2789, 0.001
  %v2854 = vsub.f32 %v2790, 0.001
  %v2855 = vsub.f32 %v2791, 0.001
  %v2856 = vsub.f32 %v2792, 0.001
  %v2857 = vsub.f32 %v2793, 0.001
  %v2858 = vsub.f32 %v2794, 0.001
  %v2859 = vsub.f32 %v2795, 0.001
  %v2860 = vsub.f32 %v2796, 0.001
  %v2861 = vsub.f32 %v2797, 0.001
  %v2862 = vsub.f32 %v2798, 0.001
  %v2863 = vsub.f32 %v2799, 0.001
  %v2864 = vsub.f32 %v2800, 0.001
  %v2865 = vsub.f32 %v2801, 0.001
  %v2866 = vsub.f32 %v2802, 0.001
  %v2867 = vsub.f32 %v2803, 0.001
  %v2868 = vsub.f32 %v2804, 0.001
  %v2869 = vsub.f32 %v2805, 0.001
  %v2870 = vsub.f32 %v2806, 0.001
  %v2871 = vsub.f32 %v2807, 0.001
  %v2872 = vsub.f32 %v2808, 0.001
  %v2873 = vsub.f32 %v2809, 0.001
  %v2874 = vsub.f32 %v2810, 0.001
  %v2875 = vsub.f32 %v2811, 0.001
  %v2876 = vsub.f32 %v2812, 0.001
  %v2877 = vsub.f32 %v2813, 0.001
  %v2878 = vsub.f32 %v2814, 0.001
  %v2879 = vsub.f32 %v2815, 0.001
  %v2880 = vsub.f32 %v2816, 0.001
  %v2881 = vsub.f32 %v2817, 0.001
  %v2882 = vsub.f32 %v2818, 0.001
  %v2883 = vsub.f32 %v2819, 0.001
  %v2884 = vsub.f32 %v2820, 0.001
  %v2885 = vsub.f32 %v2821, 0.001
  %v2886 = vsub.f32 %v2822, 0.001
  %v2887 = vsub.f32 %v2823, 0.001
  %v2888 = vsub.f32 %v2824, 0.001
  %v2889 = vsub.f32 %v2825, 0.001
  %v2890 = vsub.f32 %v2826, 0.001
  %v2891 = vsub.f32 %v2827, 0.001
  %v2892 = vsub.f32 %v2828, 0.001
  %v2893 = vsub.f32 %v2829, 0.001
  %v2894 = vsub.f32 %v2830, 0.001
  %v2895 = vsub.f32 %v2831, 0.001
  %v2896 = vsub.f32 %v2832, 0.001
  %v2897 = vsub.f32 %v2833, 0.001
  %v2898 = vsub.f32 %v2834, 0.001
  %v2899 = vsub.f32 %v2835, 0.001
  %v2900 = vsub.f32 %v2836, 0.001
  %v2901 = vsub.f32 %v2837, 0.001
  %v2902 = vsub.f32 %v2838, 0.001
  %v2903 = vsub.f32 %v2839, 0.001
  %v2904 = vsub.f32 %v2840, 0.001
  %v2905 = vsub.f32 %v2841, 0.001
  %v2906 = vsub.f32 %v2842, 0.001
  %v2907 = vsub.f32 %v2843, 0.001
  %v2908 = vsub.f32 %v2844, 0.001
  %v2909 = vsub.f32 %v2845, 0.001
  %v2910 = vsub.f32 %v2846, 0.001
  %v2911 = vsub.f32 %v2847, 0.001
  %v2912 = vsub.f32 %v2848, 0.001
  %vm2913 = vcmp.eq.s32.totalorder %v2400, 0
  %v2914 = vsel %vm2913, %v2081, %v2849
  %v2915 = vsel %vm2913, %v2086, %v2850
  %v2916 = vsel %vm2913, %v2091, %v2851
  %v2917 = vsel %vm2913, %v2096, %v2852
  %v2918 = vsel %vm2913, %v2101, %v2853
  %v2919 = vsel %vm2913, %v2106, %v2854
  %v2920 = vsel %vm2913, %v2111, %v2855
  %v2921 = vsel %vm2913, %v2116, %v2856
  %v2922 = vsel %vm2913, %v2121, %v2857
  %v2923 = vsel %vm2913, %v2126, %v2858
  %v2924 = vsel %vm2913, %v2131, %v2859
  %v2925 = vsel %vm2913, %v2136, %v2860
  %v2926 = vsel %vm2913, %v2141, %v2861
  %v2927 = vsel %vm2913, %v2146, %v2862
  %v2928 = vsel %vm2913, %v2151, %v2863
  %v2929 = vsel %vm2913, %v2156, %v2864
  %v2930 = vsel %vm2913, %v2161, %v2865
  %v2931 = vsel %vm2913, %v2166, %v2866
  %v2932 = vsel %vm2913, %v2171, %v2867
  %v2933 = vsel %vm2913, %v2176, %v2868
  %v2934 = vsel %vm2913, %v2181, %v2869
  %v2935 = vsel %vm2913, %v2186, %v2870
  %v2936 = vsel %vm2913, %v2191, %v2871
  %v2937 = vsel %vm2913, %v2196, %v2872
  %v2938 = vsel %vm2913, %v2201, %v2873
  %v2939 = vsel %vm2913, %v2206, %v2874
  %v2940 = vsel %vm2913, %v2211, %v2875
  %v2941 = vsel %vm2913, %v2216, %v2876
  %v2942 = vsel %vm2913, %v2221, %v2877
  %v2943 = vsel %vm2913, %v2226, %v2878
  %v2944 = vsel %vm2913, %v2231, %v2879
  %v2945 = vsel %vm2913, %v2236, %v2880
  %v2946 = vsel %vm2913, %v2241, %v2881
  %v2947 = vsel %vm2913, %v2246, %v2882
  %v2948 = vsel %vm2913, %v2251, %v2883
  %v2949 = vsel %vm2913, %v2256, %v2884
  %v2950 = vsel %vm2913, %v2261, %v2885
  %v2951 = vsel %vm2913, %v2266, %v2886
  %v2952 = vsel %vm2913, %v2271, %v2887
  %v2953 = vsel %vm2913, %v2276, %v2888
  %v2954 = vsel %vm2913, %v2281, %v2889
  %v2955 = vsel %vm2913, %v2286, %v2890
  %v2956 = vsel %vm2913, %v2291, %v2891
  %v2957 = vsel %vm2913, %v2296, %v2892
  %v2958 = vsel %vm2913, %v2301, %v2893
  %v2959 = vsel %vm2913, %v2306, %v2894
  %v2960 = vsel %vm2913, %v2311, %v2895
  %v2961 = vsel %vm2913, %v2316, %v2896
  %v2962 = vsel %vm2913, %v2321, %v2897
  %v2963 = vsel %vm2913, %v2326, %v2898
  %v2964 = vsel %vm2913, %v2331, %v2899
  %v2965 = vsel %vm2913, %v2336, %v2900
  %v2966 = vsel %vm2913, %v2341, %v2901
  %v2967 = vsel %vm2913, %v2346, %v2902
  %v2968 = vsel %vm2913, %v2351, %v2903
  %v2969 = vsel %vm2913, %v2356, %v2904
  %v2970 = vsel %vm2913, %v2361, %v2905
  %v2971 = vsel %vm2913, %v2366, %v2906
  %v2972 = vsel %vm2913, %v2371, %v2907
  %v2973 = vsel %vm2913, %v2376, %v2908
  %v2974 = vsel %vm2913, %v2381, %v2909
  %v2975 = vsel %vm2913, %v2386, %v2910
  %v2976 = vsel %vm2913, %v2391, %v2911
  %v2977 = vsel %vm2913, %v2396, %v2912
  %vm2978 = vcmask 31744
  %2979 = vst.msk [vmem:[%s5] sm:$0xff] %vm2978, %v2914
  %2980 = vst.msk [vmem:[%s5 + $0x8] sm:$0xff] %vm2978, %v2915
  %2981 = vst.msk [vmem:[%s5 + $0x10] sm:$0xff] %vm2978, %v2916
  %2982 = vst.msk [vmem:[%s5 + $0x18] sm:$0xff] %vm2978, %v2917
  %2983 = vst.msk [vmem:[%s5 + $0x20] sm:$0xff] %vm2978, %v2918
  %2984 = vst.msk [vmem:[%s5 + $0x28] sm:$0xff] %vm2978, %v2919
  %2985 = vst.msk [vmem:[%s5 + $0x30] sm:$0xff] %vm2978, %v2920
  %2986 = vst.msk [vmem:[%s5 + $0x38] sm:$0xff] %vm2978, %v2921
  %2987 = vst.msk [vmem:[%s5 + $0x40] sm:$0xff] %vm2978, %v2922
  %2988 = vst.msk [vmem:[%s5 + $0x48] sm:$0xff] %vm2978, %v2923
  %2989 = vst.msk [vmem:[%s5 + $0x50] sm:$0xff] %vm2978, %v2924
  %2990 = vst.msk [vmem:[%s5 + $0x58] sm:$0xff] %vm2978, %v2925
  %2991 = vst.msk [vmem:[%s5 + $0x60] sm:$0xff] %vm2978, %v2926
  %2992 = vst.msk [vmem:[%s5 + $0x68] sm:$0xff] %vm2978, %v2927
  %2993 = vst.msk [vmem:[%s5 + $0x70] sm:$0xff] %vm2978, %v2928
  %2994 = vst.msk [vmem:[%s5 + $0x78] sm:$0xff] %vm2978, %v2929
  %2995 = vst.msk [vmem:[%s5 + $0x80] sm:$0xff] %vm2978, %v2930
  %2996 = vst.msk [vmem:[%s5 + $0x88] sm:$0xff] %vm2978, %v2931
  %2997 = vst.msk [vmem:[%s5 + $0x90] sm:$0xff] %vm2978, %v2932
  %2998 = vst.msk [vmem:[%s5 + $0x98] sm:$0xff] %vm2978, %v2933
  %2999 = vst.msk [vmem:[%s5 + $0xa0] sm:$0xff] %vm2978, %v2934
  %3000 = vst.msk [vmem:[%s5 + $0xa8] sm:$0xff] %vm2978, %v2935
  %3001 = vst.msk [vmem:[%s5 + $0xb0] sm:$0xff] %vm2978, %v2936
  %3002 = vst.msk [vmem:[%s5 + $0xb8] sm:$0xff] %vm2978, %v2937
  %3003 = vst.msk [vmem:[%s5 + $0xc0] sm:$0xff] %vm2978, %v2938
  %3004 = vst.msk [vmem:[%s5 + $0xc8] sm:$0xff] %vm2978, %v2939
  %3005 = vst.msk [vmem:[%s5 + $0xd0] sm:$0xff] %vm2978, %v2940
  %3006 = vst.msk [vmem:[%s5 + $0xd8] sm:$0xff] %vm2978, %v2941
  %3007 = vst.msk [vmem:[%s5 + $0xe0] sm:$0xff] %vm2978, %v2942
  %3008 = vst.msk [vmem:[%s5 + $0xe8] sm:$0xff] %vm2978, %v2943
  %3009 = vst.msk [vmem:[%s5 + $0xf0] sm:$0xff] %vm2978, %v2944
  %3010 = vst.msk [vmem:[%s5 + $0xf8] sm:$0xff] %vm2978, %v2945
  %3011 = vst.msk [vmem:[%s5 + $0x100] sm:$0xff] %vm2978, %v2946
  %3012 = vst.msk [vmem:[%s5 + $0x108] sm:$0xff] %vm2978, %v2947
  %3013 = vst.msk [vmem:[%s5 + $0x110] sm:$0xff] %vm2978, %v2948
  %3014 = vst.msk [vmem:[%s5 + $0x118] sm:$0xff] %vm2978, %v2949
  %3015 = vst.msk [vmem:[%s5 + $0x120] sm:$0xff] %vm2978, %v2950
  %3016 = vst.msk [vmem:[%s5 + $0x128] sm:$0xff] %vm2978, %v2951
  %3017 = vst.msk [vmem:[%s5 + $0x130] sm:$0xff] %vm2978, %v2952
  %3018 = vst.msk [vmem:[%s5 + $0x138] sm:$0xff] %vm2978, %v2953
  %3019 = vst.msk [vmem:[%s5 + $0x140] sm:$0xff] %vm2978, %v2954
  %3020 = vst.msk [vmem:[%s5 + $0x148] sm:$0xff] %vm2978, %v2955
  %3021 = vst.msk [vmem:[%s5 + $0x150] sm:$0xff] %vm2978, %v2956
  %3022 = vst.msk [vmem:[%s5 + $0x158] sm:$0xff] %vm2978, %v2957
  %3023 = vst.msk [vmem:[%s5 + $0x160] sm:$0xff] %vm2978, %v2958
  %3024 = vst.msk [vmem:[%s5 + $0x168] sm:$0xff] %vm2978, %v2959
  %3025 = vst.msk [vmem:[%s5 + $0x170] sm:$0xff] %vm2978, %v2960
  %3026 = vst.msk [vmem:[%s5 + $0x178] sm:$0xff] %vm2978, %v2961
  %3027 = vst.msk [vmem:[%s5 + $0x180] sm:$0xff] %vm2978, %v2962
  %3028 = vst.msk [vmem:[%s5 + $0x188] sm:$0xff] %vm2978, %v2963
  %3029 = vst.msk [vmem:[%s5 + $0x190] sm:$0xff] %vm2978, %v2964
  %3030 = vst.msk [vmem:[%s5 + $0x198] sm:$0xff] %vm2978, %v2965
  %3031 = vst.msk [vmem:[%s5 + $0x1a0] sm:$0xff] %vm2978, %v2966
  %3032 = vst.msk [vmem:[%s5 + $0x1a8] sm:$0xff] %vm2978, %v2967
  %3033 = vst.msk [vmem:[%s5 + $0x1b0] sm:$0xff] %vm2978, %v2968
  %3034 = vst.msk [vmem:[%s5 + $0x1b8] sm:$0xff] %vm2978, %v2969
  %3035 = vst.msk [vmem:[%s5 + $0x1c0] sm:$0xff] %vm2978, %v2970
  %3036 = vst.msk [vmem:[%s5 + $0x1c8] sm:$0xff] %vm2978, %v2971
  %3037 = vst.msk [vmem:[%s5 + $0x1d0] sm:$0xff] %vm2978, %v2972
  %3038 = vst.msk [vmem:[%s5 + $0x1d8] sm:$0xff] %vm2978, %v2973
  %3039 = vst.msk [vmem:[%s5 + $0x1e0] sm:$0xff] %vm2978, %v2974
  %3040 = vst.msk [vmem:[%s5 + $0x1e8] sm:$0xff] %vm2978, %v2975
  %3041 = vst.msk [vmem:[%s5 + $0x1f0] sm:$0xff] %vm2978, %v2976
  %3042 = vst.msk [vmem:[%s5 + $0x1f8] sm:$0xff] %vm2978, %v2977
  // Predicated region
  $region22: #{tpu_custom_call.1} parent=0 // pred_check
    _
  $region23: #{tpu_custom_call.1} parent=0 // pred_check_branch
    %3044 = sbr.rel (0) target = $region25
  $region24: #{tpu_custom_call.1} parent=0 // pred_region
    _
  $region25: #{tpu_custom_call.1} parent=0 // pred_fallthru
    _
  // Predicated region
  $region26: #{tpu_custom_call.1} parent=0 // pred_check
    _
  $region27: #{tpu_custom_call.1} parent=0 // pred_check_branch
    %3046 = sbr.rel (0) target = $region29
  $region28: #{tpu_custom_call.1} parent=0 // pred_region
    _
  $region29: #{tpu_custom_call.1} parent=0 // pred_fallthru
    _

</llo_original>
